<compile_context>
chip_gen: v7x
topology: tpu7x:2x2x1
jax: 0.10.0
libtpu: 0.0.40
codegen_flags: <defaults>
</compile_context>

<pallas_src>
import functools

import jax
import jax.numpy as jnp
from jax.experimental import pallas as pl
from jax.experimental.pallas import tpu as pltpu


# phase -> (conv tap kh/kw -> source row/col offset), from (2i+p+k+1)//2 = i + RMAP[p][k]
_RMAP = ((0, 1, 1), (1, 1, 2))


# ----------------------------- Pallas kernels -------------------------------


def _upsample_conv_kernel(xp_ref, w_ref, b_ref, o_ref, *, tH, W, C, Cout):
    """Fused nearest-2x upsample + 3x3 conv (pad=1) + bias for one (batch, row-tile).

    xp_ref : (1, H+2, W+2, C)      bf16 zero-padded NHWC image (original resolution)
    w_ref  : (9*C, 4*Cout)         bf16; taps (dr,dc) stacked on K,
                                   N packs phases as [p0q0 | p0q1 | p1q0 | p1q1]
    b_ref  : (1, 4*Cout)           f32 bias replicated per phase
    o_ref  : (1, tH, 2, W, 2*Cout) output rows [h*tH, h*tH+tH), both row phases
    """
    h = pl.program_id(1)
    r0 = pl.multiple_of(h * tH, tH)
    # tH+2 row halo window, loaded once per step (the whole padded image is VMEM
    # resident for this batch element; its block index ignores h -> no re-DMA).
    win = xp_ref[0, pl.ds(r0, tH + 2), :, :]                     # (tH+2, W+2, C)
    # Single in-kernel im2col build -> one fat-K matmul on the MXU.
    taps = [win[dr:dr + tH, dc:dc + W, :].reshape(tH * W, C)
            for dr in range(3) for dc in range(3)]
    a = jnp.concatenate(taps, axis=1)                            # (tH*W, 9*C) bf16
    acc = jnp.dot(a, w_ref[...], preferred_element_type=jnp.float32)
    res = (acc + b_ref[...]).astype(o_ref.dtype).reshape(tH, W, 4 * Cout)
    o_ref[0, :, 0, :, :] = res[:, :, :2 * Cout]    # row phase p=0 (col phases on lanes)
    o_ref[0, :, 1, :, :] = res[:, :, 2 * Cout:]    # row phase p=1


def _upsample_nearest_kernel(x_ref, o_ref):
    """with_conv=False: pure nearest-2x upsample, lane-packed column phases (exact)."""
    x = x_ref[0]                                   # (tH, W, C)
    z = jnp.concatenate([x, x], axis=-1)           # (tH, W, 2C): q=0 | q=1
    o_ref[0, :, 0, :, :] = z                       # row phase p = 0
    o_ref[0, :, 1, :, :] = z                       # row phase p = 1


# ----------------------------- wrappers --------------------------------------


def prepare_upsample_conv_params(w_oihw, bias):
    """Fold the nearest-2x upsample into the conv weights (done once, outside jit).

    w_oihw: (Cout, Cin, 3, 3) PyTorch Conv2d layout; bias: (Cout,).
    Returns wz (9*Cin, 4*Cout) bf16 and bz (1, 4*Cout) f32.
    K order matches the kernel tap order (dr major, dc minor); N packs the
    (row phase p, col phase q) pairs as [p0q0 | p0q1 | p1q0 | p1q1].
    """
    Cout, Cin = int(w_oihw.shape[0]), int(w_oihw.shape[1])
    w = jnp.transpose(w_oihw, (2, 3, 1, 0)).astype(jnp.float32)  # (kh, kw, Cin, Cout)
    k_blocks = []
    for dr in range(3):
        for dc in range(3):
            phase_blocks = []
            for p in range(2):
                for q in range(2):
                    acc = jnp.zeros((Cin, Cout), jnp.float32)
                    for kh in range(3):
                        for kw in range(3):
                            if _RMAP[p][kh] == dr and _RMAP[q][kw] == dc:
                                acc = acc + w[kh, kw]
                    phase_blocks.append(acc)                     # (Cin, Cout)
            k_blocks.append(jnp.concatenate(phase_blocks, axis=1))  # (Cin, 4*Cout)
    wz = jnp.concatenate(k_blocks, axis=0).astype(jnp.bfloat16)     # (9*Cin, 4*Cout)
    bz = jnp.tile(bias.astype(jnp.float32), 4).reshape(1, 4 * Cout)
    return wz, bz


def _pick_tile_h(H):
    for tH in (8, 4, 2):
        if H % tH == 0:
            return tH
    return H


def upsample_forward(x_nchw, wz=None, bz=None):
    """Upsample.forward: nearest 2x, then 3x3 conv iff (wz, bz) given. NCHW in/out."""
    B, C, H, W = x_nchw.shape
    tH = _pick_tile_h(H)
    nH = H // tH
    # TODO(synk): the NCHW<->NHWC boundary transposes read/write the (4x-sized)
    # activation in HBM; in a full network keep this block NHWC end-to-end.
    x = jnp.transpose(x_nchw, (0, 2, 3, 1))                      # NHWC, channels on lanes
    cparams = pltpu.CompilerParams(dimension_semantics=("parallel", "parallel"))

    if wz is None:                                               # with_conv = False
        Cout = C
        out5 = pl.pallas_call(
            _upsample_nearest_kernel,
            out_shape=jax.ShapeDtypeStruct((B, H, 2, W, 2 * C), x.dtype),
            grid=(B, nH),
            in_specs=[pl.BlockSpec((1, tH, W, C), lambda b, h: (b, h, 0, 0))],
            out_specs=pl.BlockSpec((1, tH, 2, W, 2 * C),
                                   lambda b, h: (b, h, 0, 0, 0)),
            compiler_params=cparams,
            cost_estimate=pl.CostEstimate(
                flops=0, transcendentals=0,
                bytes_accessed=int(5 * x.size * x.dtype.itemsize)),
        )(x)
    else:                                                        # with_conv = True
        Cout = bz.shape[-1] // 4
        out_dtype = x.dtype
        # +1 zero pad at ORIGINAL resolution + bf16 operand cast; XLA fuses both
        # into the same copy as the transpose above (no extra HBM pass).
        xp = jnp.pad(x, ((0, 0), (1, 1), (1, 1), (0, 0))).astype(jnp.bfloat16)
        flops = 2 * B * H * W * (9 * C) * (4 * Cout)
        bytes_accessed = (xp.size * 2 + wz.size * 2 + bz.size * 4
                          + B * H * 2 * W * 2 * Cout * jnp.dtype(out_dtype).itemsize)
        # Per-step VMEM (demo: C=Cout=64, tH=8, W=16): 2x padded image (bf16) +
        # 2x weights (bf16) + 2x output tile + im2col + acc  << default scoped limit.
        # TODO(synk): for production shapes (e.g. C=512, H>=64) use overlapping
        # tH+2-row input blocks and single-buffer the constant weights
        # (pipeline_mode=pl.Buffered(1)) to fit v7x's 64 MiB VMEM.
        out5 = pl.pallas_call(
            functools.partial(_upsample_conv_kernel, tH=tH, W=W, C=C, Cout=Cout),
            out_shape=jax.ShapeDtypeStruct((B, H, 2, W, 2 * Cout), out_dtype),
            grid=(B, nH),
            in_specs=[
                # Whole padded image, DMA'd once per batch element (index ignores h);
                # the kernel slices its tH+2-row halo window with pl.ds.
                pl.BlockSpec((1, H + 2, W + 2, C), lambda b, h: (b, 0, 0, 0)),
                pl.BlockSpec((9 * C, 4 * Cout), lambda b, h: (0, 0)),
                pl.BlockSpec((1, 4 * Cout), lambda b, h: (0, 0)),
            ],
            out_specs=pl.BlockSpec((1, tH, 2, W, 2 * Cout),
                                   lambda b, h: (b, h, 0, 0, 0)),
            compiler_params=cparams,
            cost_estimate=pl.CostEstimate(flops=int(flops), transcendentals=0,
                                          bytes_accessed=int(bytes_accessed)),
        )(xp, wz, bz)

    out = out5.reshape(B, 2 * H, 2 * W, Cout)   # free: identical row-major layout
    return jnp.transpose(out, (0, 3, 1, 2))     # NHWC -> NCHW (module interface)


# ----------------------------- main -------------------------------------------

if __name__ == "__main__":
    key = jax.random.PRNGKey(0)
    kx, kw, kb = jax.random.split(key, 3)

    B, C, H, W = 2, 64, 16, 16                                   # 16x16 -> 32x32
    x = jax.random.normal(kx, (B, C, H, W), jnp.float32)
    w = jax.random.normal(kw, (C, C, 3, 3), jnp.float32) * 0.05  # Conv2d weight (OIHW)
    b = jax.random.normal(kb, (C,), jnp.float32) * 0.05

    fwd = jax.jit(upsample_forward)

    # ---- with_conv=True: fused upsample + conv kernel ----
    wz, bz = prepare_upsample_conv_params(w, b)
    out = fwd(x, wz, bz)
    jax.block_until_ready(out)
    assert out.shape == (B, C, 2 * H, 2 * W) and out.dtype == jnp.float32

    # Reference: F.interpolate(scale_factor=2, mode='nearest') + Conv2d(3,3,pad=1).
    x_up = jnp.repeat(jnp.repeat(x, 2, axis=2), 2, axis=3)
    ref = jax.lax.conv_general_dilated(
        x_up, w, window_strides=(1, 1), padding=((1, 1), (1, 1)),
        dimension_numbers=("NCHW", "OIHW", "NCHW"),
        precision=jax.lax.Precision.HIGHEST) + b[None, :, None, None]
    max_err = float(jnp.max(jnp.abs(out - ref)))
    # bf16 MXU operands with f32 accumulation: |err| ~ O(sqrt(9C) * eps_bf16 * |w||x|).
    assert max_err < 6e-2, f"with_conv mismatch: max abs err {max_err}"

    # ---- with_conv=False: pure nearest-2x kernel (bit-exact) ----
    out_nc = fwd(x)
    jax.block_until_ready(out_nc)
    assert out_nc.shape == (B, C, 2 * H, 2 * W)
    assert bool(jnp.all(out_nc == x_up))

    print("KERNEL_OK")
</pallas_src>

<mosaic_0001>
module attributes {stable_mosaic.version = 11 : i64} {
  func.func @_upsample_conv_kernel(%arg0: i32, %arg1: i32, %arg2: memref<1x18x18x64xbf16, #tpu.memory_space<vmem>>, %arg3: memref<576x256xbf16, #tpu.memory_space<vmem>>, %arg4: memref<1x256xf32, #tpu.memory_space<vmem>>, %arg5: memref<1x8x2x16x128xf32, #tpu.memory_space<vmem>>) attributes {dimension_semantics = [#tpu.dimension_semantics<parallel>, #tpu.dimension_semantics<parallel>], iteration_bounds = array<i64: 2, 2>, scalar_prefetch = 0 : i64, scratch_operands = 0 : i64, tpu.core_type = #tpu.core_type<tc>, window_params = [{transform_indices = @transform_0, window_bounds = array<i64: 1, 18, 18, 64>}, {pipeline_mode = #tpu.pipeline_mode<synchronous>, transform_indices = @transform_1, window_bounds = array<i64: 576, 256>}, {pipeline_mode = #tpu.pipeline_mode<synchronous>, transform_indices = @transform_2, window_bounds = array<i64: 1, 256>}, {transform_indices = @transform_3, window_bounds = array<i64: 1, 8, 2, 16, 128>}]} {
    %c8_i32 = arith.constant 8 : i32
    %0 = arith.muli %arg1, %c8_i32 : i32
    %1 = tpu.assume_multiple %0, 8 : i32
    %c0 = arith.constant 0 : index
    %2 = arith.index_cast %1 : i32 to index
    %c0_0 = arith.constant 0 : index
    %c0_1 = arith.constant 0 : index
    %3 = vector.load %arg2[%c0, %2, %c0_0, %c0_1] : memref<1x18x18x64xbf16, #tpu.memory_space<vmem>>, vector<1x10x18x64xbf16>
    %4 = vector.shape_cast %3 : vector<1x10x18x64xbf16> to vector<10x18x64xbf16>
    %5 = vector.extract_strided_slice %4 {offsets = [0, 0, 0], sizes = [8, 16, 64], strides = [1, 1, 1]} : vector<10x18x64xbf16> to vector<8x16x64xbf16>
    %6 = vector.shape_cast %5 : vector<8x16x64xbf16> to vector<128x64xbf16>
    %7 = vector.extract_strided_slice %4 {offsets = [0, 1, 0], sizes = [8, 16, 64], strides = [1, 1, 1]} : vector<10x18x64xbf16> to vector<8x16x64xbf16>
    %8 = vector.shape_cast %7 : vector<8x16x64xbf16> to vector<128x64xbf16>
    %9 = vector.extract_strided_slice %4 {offsets = [0, 2, 0], sizes = [8, 16, 64], strides = [1, 1, 1]} : vector<10x18x64xbf16> to vector<8x16x64xbf16>
    %10 = vector.shape_cast %9 : vector<8x16x64xbf16> to vector<128x64xbf16>
    %11 = vector.extract_strided_slice %4 {offsets = [1, 0, 0], sizes = [8, 16, 64], strides = [1, 1, 1]} : vector<10x18x64xbf16> to vector<8x16x64xbf16>
    %12 = vector.shape_cast %11 : vector<8x16x64xbf16> to vector<128x64xbf16>
    %13 = vector.extract_strided_slice %4 {offsets = [1, 1, 0], sizes = [8, 16, 64], strides = [1, 1, 1]} : vector<10x18x64xbf16> to vector<8x16x64xbf16>
    %14 = vector.shape_cast %13 : vector<8x16x64xbf16> to vector<128x64xbf16>
    %15 = vector.extract_strided_slice %4 {offsets = [1, 2, 0], sizes = [8, 16, 64], strides = [1, 1, 1]} : vector<10x18x64xbf16> to vector<8x16x64xbf16>
    %16 = vector.shape_cast %15 : vector<8x16x64xbf16> to vector<128x64xbf16>
    %17 = vector.extract_strided_slice %4 {offsets = [2, 0, 0], sizes = [8, 16, 64], strides = [1, 1, 1]} : vector<10x18x64xbf16> to vector<8x16x64xbf16>
    %18 = vector.shape_cast %17 : vector<8x16x64xbf16> to vector<128x64xbf16>
    %19 = vector.extract_strided_slice %4 {offsets = [2, 1, 0], sizes = [8, 16, 64], strides = [1, 1, 1]} : vector<10x18x64xbf16> to vector<8x16x64xbf16>
    %20 = vector.shape_cast %19 : vector<8x16x64xbf16> to vector<128x64xbf16>
    %21 = vector.extract_strided_slice %4 {offsets = [2, 2, 0], sizes = [8, 16, 64], strides = [1, 1, 1]} : vector<10x18x64xbf16> to vector<8x16x64xbf16>
    %22 = vector.shape_cast %21 : vector<8x16x64xbf16> to vector<128x64xbf16>
    %23 = tpu.concatenate %6, %8, %10, %12, %14, %16, %18, %20, %22 in 1 : vector<128x64xbf16>, vector<128x64xbf16>, vector<128x64xbf16>, vector<128x64xbf16>, vector<128x64xbf16>, vector<128x64xbf16>, vector<128x64xbf16>, vector<128x64xbf16>, vector<128x64xbf16> -> vector<128x576xbf16>
    %c0_2 = arith.constant 0 : index
    %c0_3 = arith.constant 0 : index
    %24 = vector.load %arg3[%c0_2, %c0_3] : memref<576x256xbf16, #tpu.memory_space<vmem>>, vector<576x256xbf16>
    %cst = arith.constant dense<0.000000e+00> : vector<128x256xf32>
    %25 = tpu.matmul %23, %24, %cst {dimension_numbers = #tpu.dot_dimension_numbers<[1], [0], [0], [1], [0, 0, 1, 1], [], []>} : vector<128x576xbf16>, vector<576x256xbf16>, vector<128x256xf32> -> vector<128x256xf32>
    %c0_4 = arith.constant 0 : index
    %c0_5 = arith.constant 0 : index
    %26 = vector.load %arg4[%c0_4, %c0_5] : memref<1x256xf32, #tpu.memory_space<vmem>>, vector<1x256xf32>
    %27 = vector.broadcast %26 : vector<1x256xf32> to vector<128x256xf32>
    %28 = arith.addf %25, %27 : vector<128x256xf32>
    %29 = vector.shape_cast %28 : vector<128x256xf32> to vector<8x16x256xf32>
    %30 = vector.extract_strided_slice %29 {offsets = [0, 0, 0], sizes = [8, 16, 128], strides = [1, 1, 1]} : vector<8x16x256xf32> to vector<8x16x128xf32>
    %c0_6 = arith.constant 0 : index
    %c0_7 = arith.constant 0 : index
    %c0_8 = arith.constant 0 : index
    %c0_9 = arith.constant 0 : index
    %c0_10 = arith.constant 0 : index
    %31 = vector.load %arg5[%c0_6, %c0_7, %c0_8, %c0_9, %c0_10] : memref<1x8x2x16x128xf32, #tpu.memory_space<vmem>>, vector<1x8x1x16x128xf32>
    %32 = vector.shape_cast %31 : vector<1x8x1x16x128xf32> to vector<8x16x128xf32>
    %33 = vector.shape_cast %30 : vector<8x16x128xf32> to vector<1x8x1x16x128xf32>
    tpu.vector_store %arg5[%c0_6, %c0_7, %c0_8, %c0_9, %c0_10], %33 {strides = array<i32>} : memref<1x8x2x16x128xf32, #tpu.memory_space<vmem>>, vector<1x8x1x16x128xf32>,
    %34 = vector.extract_strided_slice %29 {offsets = [0, 0, 128], sizes = [8, 16, 128], strides = [1, 1, 1]} : vector<8x16x256xf32> to vector<8x16x128xf32>
    %c0_11 = arith.constant 0 : index
    %c0_12 = arith.constant 0 : index
    %c1 = arith.constant 1 : index
    %c0_13 = arith.constant 0 : index
    %c0_14 = arith.constant 0 : index
    %35 = vector.load %arg5[%c0_11, %c0_12, %c1, %c0_13, %c0_14] : memref<1x8x2x16x128xf32, #tpu.memory_space<vmem>>, vector<1x8x1x16x128xf32>
    %36 = vector.shape_cast %35 : vector<1x8x1x16x128xf32> to vector<8x16x128xf32>
    %37 = vector.shape_cast %34 : vector<8x16x128xf32> to vector<1x8x1x16x128xf32>
    tpu.vector_store %arg5[%c0_11, %c0_12, %c1, %c0_13, %c0_14], %37 {strides = array<i32>} : memref<1x8x2x16x128xf32, #tpu.memory_space<vmem>>, vector<1x8x1x16x128xf32>,
    return
  }
  func.func @transform_0(%arg0: i32, %arg1: i32) -> (i32, i32, i32, i32) {
    %c0_i32 = arith.constant 0 : i32
    %c0_i32_0 = arith.constant 0 : i32
    %c0_i32_1 = arith.constant 0 : i32
    %c0_i32_2 = arith.constant 0 : i32
    return %arg0, %c0_i32, %c0_i32_0, %c0_i32_1 : i32, i32, i32, i32
  }
  func.func @transform_1(%arg0: i32, %arg1: i32) -> (i32, i32) {
    %c0_i32 = arith.constant 0 : i32
    %c0_i32_0 = arith.constant 0 : i32
    %c0_i32_1 = arith.constant 0 : i32
    return %c0_i32, %c0_i32_0 : i32, i32
  }
  func.func @transform_2(%arg0: i32, %arg1: i32) -> (i32, i32) {
    %c0_i32 = arith.constant 0 : i32
    %c0_i32_0 = arith.constant 0 : i32
    %c0_i32_1 = arith.constant 0 : i32
    return %c0_i32, %c0_i32_0 : i32, i32
  }
  func.func @transform_3(%arg0: i32, %arg1: i32) -> (i32, i32, i32, i32, i32) {
    %c0_i32 = arith.constant 0 : i32
    %c0_i32_0 = arith.constant 0 : i32
    %c0_i32_1 = arith.constant 0 : i32
    %c0_i32_2 = arith.constant 0 : i32
    return %arg0, %arg1, %c0_i32, %c0_i32_0, %c0_i32_1 : i32, i32, i32, i32, i32
  }
}

</mosaic_0001>

<llo_original>
// kernel: upsample_forward.1
$region0: #{upsample_forward.1}
  #allocation0 [shape = 'u32[]', space=smem, size = 0x4, offset = 0x4, fixed_abs, tag = 'smem constant byte address 0x4 - core index']
  #allocation1 [shape = 'u32[144,128]{1,0:T(1,128)}', space=vmem, size = 0x12000, scoped, tag = 'internal scratch']
  %s0 = inlined_call_operand.vmem [shape: bf16[2,18,18,64], index: 0, kind: input, shape index: {}]
  %s1 = inlined_call_operand.vmem [shape: bf16[576,256], index: 1, kind: input, shape index: {}]
  %s2 = inlined_call_operand.vmem [shape: f32[1,256], index: 2, kind: input, shape index: {}]
  %s3 = inlined_call_operand.vmem [shape: f32[2,16,2,16,128], index: 3, kind: output, shape index: {}]
  %s4 = sld [smem:[#allocation0]]
  $region45: #{upsample_forward.1} parent=0
    _
  %s6 = ssub.s32 1, %s4
  %s7 = scalar_select 0, %s6, %s4
  loop: start=0, step=1, limit=6
  $region2: #{upsample_forward.1} parent=0 // loop_pre_header
    _
  $region3: #{upsample_forward.1} parent=0 // loop_header
    %s9 = sphi 0, %s13
    %p10 = scmp.ge.s32.totalorder %s9, 6
    %s16 = sphi 0, %s28
    %s17 = sphi 0, %s24
    %s18 = sphi 0, %s16
    %s19 = sphi 0, %s17
    %s20 = sphi 0, %s18
    %s21 = sphi 0, %s19
    %s31 = sphi 0, %s33
    %s34 = sphi 0, %s31
    %s35 = sphi 0, %s34
    %s51 = sphi 0, %s35
    %s55 = sphi 0, %s55
    %s57 = sphi 0, %s55
    %s58 = sphi 0, %s57
    %s72 = sphi 0, %s58
    %s76 = sphi 0, %s76
    %s78 = sphi 0, %s76
    %s79 = sphi 0, %s78
    %s93 = sphi 0, %s79
    %s101 = sphi 0, %s103
    %s104 = sphi 0, %s101
    %s105 = sphi 0, %s104
    %s121 = sphi 0, %s105
  $region4: #{upsample_forward.1} parent=0 // loop_header_branch
    %12 = sbr.rel (%p10) target = $region8
  $region5: #{upsample_forward.1} parent=0 // loop_body
    %s14 = ssub.s32 %s9, 1
    %s15 = ssub.s32 %s9, 2
    %s22 = sadd.s32 1, %s17
    %p23 = scmp.ge.s32.totalorder %s22, 2
    %s24 = scalar_select %p23, 0, %s22
    %s25 = sadd.s32 1, %s16
    %s26 = scalar_select %p23, %s25, %s16
    %p27 = scmp.ge.s32.totalorder %s26, 2
    %s28 = scalar_select %p27, 0, %s26
    %s29 = ssub.s32 %s16, %s28
    %p30 = scmp.eq.s32.totalorder %s29, 0
    %s32 = sadd.s32 %s31, 1
    %s33 = scalar_select %p30, %s31, %s32
    %p36 = pneg %p30
    %p37 = scmp.eq.s32.totalorder %s9, 3
    %p38 = por %p36, %p37
    %p39 = scmp.ne.s32.totalorder %s31, %s34
    %p40 = scmp.eq.s32.totalorder %s9, 0
    %p41 = por %p39, %p40
    %p42 = scmp.ne.s32.totalorder %s31, %s34
    %p43 = scmp.eq.s32.totalorder %s14, 3
    %p44 = por %p42, %p43
    %p45 = scmp.ne.s32.totalorder %s34, %s35
    %p46 = scmp.eq.s32.totalorder %s14, 0
    %p47 = por %p45, %p46
    %p48 = scmp.ne.s32.totalorder %s34, %s35
    %p49 = scmp.eq.s32.totalorder %s15, 3
    %p50 = por %p48, %p49
    %p52 = scmp.ne.s32.totalorder %s35, %s51
    %p53 = scmp.eq.s32.totalorder %s15, 0
    %p54 = por %p52, %p53
    %s56 = sadd.s32 %s55, 1
    %p59 = scmp.eq.s32.totalorder %s9, 3
    %p60 = scmp.ne.s32.totalorder %s55, %s57
    %p61 = scmp.eq.s32.totalorder %s9, 0
    %p62 = por %p60, %p61
    %p63 = scmp.ne.s32.totalorder %s55, %s57
    %p64 = scmp.eq.s32.totalorder %s14, 3
    %p65 = por %p63, %p64
    %p66 = scmp.ne.s32.totalorder %s57, %s58
    %p67 = scmp.eq.s32.totalorder %s14, 0
    %p68 = por %p66, %p67
    %p69 = scmp.ne.s32.totalorder %s57, %s58
    %p70 = scmp.eq.s32.totalorder %s15, 3
    %p71 = por %p69, %p70
    %p73 = scmp.ne.s32.totalorder %s58, %s72
    %p74 = scmp.eq.s32.totalorder %s15, 0
    %p75 = por %p73, %p74
    %s77 = sadd.s32 %s76, 1
    %p80 = scmp.eq.s32.totalorder %s9, 3
    %p81 = scmp.ne.s32.totalorder %s76, %s78
    %p82 = scmp.eq.s32.totalorder %s9, 0
    %p83 = por %p81, %p82
    %p84 = scmp.ne.s32.totalorder %s76, %s78
    %p85 = scmp.eq.s32.totalorder %s14, 3
    %p86 = por %p84, %p85
    %p87 = scmp.ne.s32.totalorder %s78, %s79
    %p88 = scmp.eq.s32.totalorder %s14, 0
    %p89 = por %p87, %p88
    %p90 = scmp.ne.s32.totalorder %s78, %s79
    %p91 = scmp.eq.s32.totalorder %s15, 3
    %p92 = por %p90, %p91
    %p94 = scmp.ne.s32.totalorder %s79, %s93
    %p95 = scmp.eq.s32.totalorder %s15, 0
    %p96 = por %p94, %p95
    %s97 = ssub.s32 %s16, %s28
    %s98 = ssub.s32 %s17, %s24
    %s99 = sor.u32 %s97, %s98
    %p100 = scmp.eq.s32.totalorder %s99, 0
    %s102 = sadd.s32 %s101, 1
    %s103 = scalar_select %p100, %s101, %s102
    %p106 = pneg %p100
    %p107 = scmp.eq.s32.totalorder %s9, 3
    %p108 = por %p106, %p107
    %p109 = scmp.ne.s32.totalorder %s101, %s104
    %p110 = scmp.eq.s32.totalorder %s9, 0
    %p111 = por %p109, %p110
    %p112 = scmp.ne.s32.totalorder %s101, %s104
    %p113 = scmp.eq.s32.totalorder %s14, 3
    %p114 = por %p112, %p113
    %p115 = scmp.ne.s32.totalorder %s104, %s105
    %p116 = scmp.eq.s32.totalorder %s14, 0
    %p117 = por %p115, %p116
    %p118 = scmp.ne.s32.totalorder %s104, %s105
    %p119 = scmp.eq.s32.totalorder %s15, 3
    %p120 = por %p118, %p119
    %p122 = scmp.ne.s32.totalorder %s105, %s121
    %p123 = scmp.eq.s32.totalorder %s15, 0
    %p124 = por %p122, %p123
    %p125 = scmp.le.s32.totalorder 1, %s9
    %p126 = scmp.lt.s32.totalorder %s9, 5
    %p127 = pnand %p125, %p126
    %p128 = pneg %p127
    // Predicated region
    $region9: #{upsample_forward.1} parent=5 // pred_check
      _
    $region10: #{upsample_forward.1} parent=5 // pred_check_branch
      %130 = sbr.rel (%p127) target = $region12
    $region11: #{upsample_forward.1} parent=5 // pred_region
      %s131 = ssub.s32 %s9, 1
      // Predicated region
      $region13: #{upsample_forward.1} parent=11 // pred_check
        %p132 = pneg %p68
      $region14: #{upsample_forward.1} parent=11 // pred_check_branch
        %134 = sbr.rel (%p132) target = $region16
      $region15: #{upsample_forward.1} parent=11 // pred_region
        _
      $region16: #{upsample_forward.1} parent=11 // pred_fallthru
        _
      // Predicated region
      $region17: #{upsample_forward.1} parent=11 // pred_check
        %p135 = pneg %p89
      $region18: #{upsample_forward.1} parent=11 // pred_check_branch
        %137 = sbr.rel (%p135) target = $region20
      $region19: #{upsample_forward.1} parent=11 // pred_region
        _
      $region20: #{upsample_forward.1} parent=11 // pred_fallthru
        _
    $region12: #{upsample_forward.1} parent=5 // pred_fallthru
      _
    %p138 = scmp.lt.s32.totalorder %s9, 4
    // Predicated region
    $region21: #{upsample_forward.1} parent=5 // pred_check
      %p139 = pneg %p138
    $region22: #{upsample_forward.1} parent=5 // pred_check_branch
      %141 = sbr.rel (%p139) target = $region24
    $region23: #{upsample_forward.1} parent=5 // pred_region
      // Predicated region
      $region25: #{upsample_forward.1} parent=23 // pred_check
        %p142 = pneg %p41
      $region26: #{upsample_forward.1} parent=23 // pred_check_branch
        %144 = sbr.rel (%p142) target = $region28
      $region27: #{upsample_forward.1} parent=23 // pred_region
        %p145 = scmp.lt.s32.totalorder %s16, 1
        %s146 = scalar_select %p145, %s16, 1
        %s147 = smul.addr %s146, 54
        %s148 = smul.addr %s147, 4
        %s149 = scalar_lea.vmem %s0, %s148
      $region28: #{upsample_forward.1} parent=23 // pred_fallthru
        _
    $region24: #{upsample_forward.1} parent=5 // pred_fallthru
      _
    %p150 = scmp.le.s32.totalorder 1, %s9
    %p151 = scmp.lt.s32.totalorder %s9, 5
    %p152 = pnand %p150, %p151
    %p153 = pneg %p152
    // Predicated region
    $region29: #{upsample_forward.1} parent=5 // pred_check
      _
    $region30: #{upsample_forward.1} parent=5 // pred_check_branch
      %155 = sbr.rel (%p152) target = $region32
    $region31: #{upsample_forward.1} parent=5 // pred_region
      %s156 = ssub.s32 %s9, 1
      %p157 = scmp.lt.s32.totalorder %s18, 1
      %s158 = scalar_select %p157, %s18, 1
      %s159 = smul.addr %s158, 54
      %s160 = smul.addr %s159, 4
      %s161 = scalar_lea.vmem %s0, %s160
      %p162 = pneg %p47
      %p163 = pneg %p44
      %p164 = pneg %p68
      %p165 = pneg %p65
      %p166 = pneg %p89
      %p167 = pneg %p86
      %p168 = pneg %p117
      %p169 = pneg %p114
      %s170 = smul.u32 8, %s19
      %p171 = scmp.lt.s32.totalorder %s18, 1
      %s172 = scalar_select %p171, %s18, 1
      %p173 = scmp.lt.s32.totalorder %s170, 15
      %s174 = scalar_select %p173, %s170, 15
      %s175 = smul.addr %s174, 4
      %s176 = smul.addr %s172, 64
      %s177 = sadd.s32 %s175, %s176
      %s178 = smul.addr %s177, 8
      %s179 = scalar_lea.vmem %s3, %s178
      %p180 = scmp.lt.s32.totalorder %s18, 1
      %s181 = scalar_select %p180, %s18, 1
      %s182 = smul.addr %s181, 54
      %s183 = smul.addr %s182, 4
      %s184 = scalar_lea.vmem %s0, %s183
      %s185 = smul.u32 8, %s19
      %p186 = scmp.lt.s32.totalorder %s18, 1
      %s187 = scalar_select %p186, %s18, 1
      %p188 = scmp.lt.s32.totalorder %s185, 15
      %s189 = scalar_select %p188, %s185, 15
      %s190 = smul.addr %s189, 4
      %s191 = smul.addr %s187, 64
      %s192 = sadd.s32 %s190, %s191
      %s193 = smul.addr %s192, 8
      %s194 = scalar_lea.vmem %s3, %s193
      %s195 = smul.u32 8, %s19
      %s197 = smul.u32 %s19, 8
      %s198 = smul.u32 %s197, 3
      %s199 = smul.addr %s198, 4
      %s200 = scalar_lea.vmem %s184, %s199
      %v201 = vld [vmem:[%s200] sm:$0xf]
      %v202 = vld [vmem:[%s200 + $0x4] sm:$0xf]
      %v203 = vld [vmem:[%s200 + $0x8] sm:$0x1]
      %v204 = vld [vmem:[%s200 + $0xc] sm:$0xf]
      %v205 = vld [vmem:[%s200 + $0x10] sm:$0xf]
      %v206 = vld [vmem:[%s200 + $0x14] sm:$0x1]
      %v207 = vld [vmem:[%s200 + $0x18] sm:$0xf]
      %v208 = vld [vmem:[%s200 + $0x1c] sm:$0xf]
      %v209 = vld [vmem:[%s200 + $0x20] sm:$0x1]
      %v210 = vld [vmem:[%s200 + $0x24] sm:$0xf]
      %v211 = vld [vmem:[%s200 + $0x28] sm:$0xf]
      %v212 = vld [vmem:[%s200 + $0x2c] sm:$0x1]
      %v213 = vld [vmem:[%s200 + $0x30] sm:$0xf]
      %v214 = vld [vmem:[%s200 + $0x34] sm:$0xf]
      %v215 = vld [vmem:[%s200 + $0x38] sm:$0x1]
      %v216 = vld [vmem:[%s200 + $0x3c] sm:$0xf]
      %v217 = vld [vmem:[%s200 + $0x40] sm:$0xf]
      %v218 = vld [vmem:[%s200 + $0x44] sm:$0x1]
      %v219 = vld [vmem:[%s200 + $0x48] sm:$0xf]
      %v220 = vld [vmem:[%s200 + $0x4c] sm:$0xf]
      %v221 = vld [vmem:[%s200 + $0x50] sm:$0x1]
      %v222 = vld [vmem:[%s200 + $0x54] sm:$0xf]
      %v223 = vld [vmem:[%s200 + $0x58] sm:$0xf]
      %v224 = vld [vmem:[%s200 + $0x5c] sm:$0x1]
      %v225 = vld [vmem:[%s200 + $0x60] sm:$0xf]
      %v226 = vld [vmem:[%s200 + $0x64] sm:$0xf]
      %v227 = vld [vmem:[%s200 + $0x68] sm:$0x1]
      %v228 = vld [vmem:[%s200 + $0x6c] sm:$0xf]
      %v229 = vld [vmem:[%s200 + $0x70] sm:$0xf]
      %v230 = vld [vmem:[%s200 + $0x74] sm:$0x1]
      %vm231 = vsmask.f32 3328
      %vm232 = vsmask.f32 7440
      %vm233 = vmor %vm231, %vm232
      %v235 = vshrl.u32 %v201, 16
      %v237 = vrot.slane %v235, 4
      %v238 = vshll.u32 %v201, 16
      %v240 = vrot.slane %v238, 5
      %v241 = vor.u32 %v237, %v240
      %v242 = vrot.slane %v241, 4
      %v244 = vshll.u32 %v202, 16
      %v246 = vrot.slane %v244, 5
      %v247 = vsel %vm233, %v242, %v246
      %v248 = vshrl.u32 %v202, 16
      %v250 = vrot.slane %v248, 4
      %v251 = vor.u32 %v250, %v246
      %v252 = vrot.slane %v251, 4
      %v254 = vshll.u32 %v203, 16
      %v256 = vrot.slane %v254, 5
      %v257 = vsel %vm233, %v252, %v256
      %v259 = vshrl.u32 %v204, 16
      %v261 = vrot.slane %v259, 4
      %v262 = vshll.u32 %v204, 16
      %v264 = vrot.slane %v262, 5
      %v265 = vor.u32 %v261, %v264
      %v266 = vrot.slane %v265, 4
      %v268 = vshll.u32 %v205, 16
      %v270 = vrot.slane %v268, 5
      %v271 = vsel %vm233, %v266, %v270
      %v272 = vshrl.u32 %v205, 16
      %v274 = vrot.slane %v272, 4
      %v275 = vor.u32 %v274, %v270
      %v276 = vrot.slane %v275, 4
      %v278 = vshll.u32 %v206, 16
      %v280 = vrot.slane %v278, 5
      %v281 = vsel %vm233, %v276, %v280
      %v283 = vshrl.u32 %v207, 16
      %v285 = vrot.slane %v283, 4
      %v286 = vshll.u32 %v207, 16
      %v288 = vrot.slane %v286, 5
      %v289 = vor.u32 %v285, %v288
      %v290 = vrot.slane %v289, 4
      %v292 = vshll.u32 %v208, 16
      %v294 = vrot.slane %v292, 5
      %v295 = vsel %vm233, %v290, %v294
      %v296 = vshrl.u32 %v208, 16
      %v298 = vrot.slane %v296, 4
      %v299 = vor.u32 %v298, %v294
      %v300 = vrot.slane %v299, 4
      %v302 = vshll.u32 %v209, 16
      %v304 = vrot.slane %v302, 5
      %v305 = vsel %vm233, %v300, %v304
      %v307 = vshrl.u32 %v210, 16
      %v309 = vrot.slane %v307, 4
      %v310 = vshll.u32 %v210, 16
      %v312 = vrot.slane %v310, 5
      %v313 = vor.u32 %v309, %v312
      %v314 = vrot.slane %v313, 4
      %v316 = vshll.u32 %v211, 16
      %v318 = vrot.slane %v316, 5
      %v319 = vsel %vm233, %v314, %v318
      %v320 = vshrl.u32 %v211, 16
      %v322 = vrot.slane %v320, 4
      %v323 = vor.u32 %v322, %v318
      %v324 = vrot.slane %v323, 4
      %v326 = vshll.u32 %v212, 16
      %v328 = vrot.slane %v326, 5
      %v329 = vsel %vm233, %v324, %v328
      %v331 = vshrl.u32 %v213, 16
      %v333 = vrot.slane %v331, 4
      %v334 = vshll.u32 %v213, 16
      %v336 = vrot.slane %v334, 5
      %v337 = vor.u32 %v333, %v336
      %v338 = vrot.slane %v337, 4
      %v340 = vshll.u32 %v214, 16
      %v342 = vrot.slane %v340, 5
      %v343 = vsel %vm233, %v338, %v342
      %v344 = vshrl.u32 %v214, 16
      %v346 = vrot.slane %v344, 4
      %v347 = vor.u32 %v346, %v342
      %v348 = vrot.slane %v347, 4
      %v350 = vshll.u32 %v215, 16
      %v352 = vrot.slane %v350, 5
      %v353 = vsel %vm233, %v348, %v352
      %v355 = vshrl.u32 %v216, 16
      %v357 = vrot.slane %v355, 4
      %v358 = vshll.u32 %v216, 16
      %v360 = vrot.slane %v358, 5
      %v361 = vor.u32 %v357, %v360
      %v362 = vrot.slane %v361, 4
      %v364 = vshll.u32 %v217, 16
      %v366 = vrot.slane %v364, 5
      %v367 = vsel %vm233, %v362, %v366
      %v368 = vshrl.u32 %v217, 16
      %v370 = vrot.slane %v368, 4
      %v371 = vor.u32 %v370, %v366
      %v372 = vrot.slane %v371, 4
      %v374 = vshll.u32 %v218, 16
      %v376 = vrot.slane %v374, 5
      %v377 = vsel %vm233, %v372, %v376
      %v379 = vshrl.u32 %v219, 16
      %v381 = vrot.slane %v379, 4
      %v382 = vshll.u32 %v219, 16
      %v384 = vrot.slane %v382, 5
      %v385 = vor.u32 %v381, %v384
      %v386 = vrot.slane %v385, 4
      %v388 = vshll.u32 %v220, 16
      %v390 = vrot.slane %v388, 5
      %v391 = vsel %vm233, %v386, %v390
      %v392 = vshrl.u32 %v220, 16
      %v394 = vrot.slane %v392, 4
      %v395 = vor.u32 %v394, %v390
      %v396 = vrot.slane %v395, 4
      %v398 = vshll.u32 %v221, 16
      %v400 = vrot.slane %v398, 5
      %v401 = vsel %vm233, %v396, %v400
      %v403 = vshrl.u32 %v222, 16
      %v405 = vrot.slane %v403, 4
      %v406 = vshll.u32 %v222, 16
      %v408 = vrot.slane %v406, 5
      %v409 = vor.u32 %v405, %v408
      %v410 = vrot.slane %v409, 4
      %v412 = vshll.u32 %v223, 16
      %v414 = vrot.slane %v412, 5
      %v415 = vsel %vm233, %v410, %v414
      %v416 = vshrl.u32 %v223, 16
      %v418 = vrot.slane %v416, 4
      %v419 = vor.u32 %v418, %v414
      %v420 = vrot.slane %v419, 4
      %v422 = vshll.u32 %v224, 16
      %v424 = vrot.slane %v422, 5
      %v425 = vsel %vm233, %v420, %v424
      %vm450 = vcmask 1042432
      %vm451 = vcmask 1046532
      %vm452 = vmor %vm450, %vm451
      %v453 = vrot.slane %v201, 5
      %v454 = vrot.slane %v453, 4
      %v455 = vrot.slane %v202, 5
      %v456 = vsel %vm452, %v454, %v455
      %v457 = vrot.slane %v455, 4
      %v458 = vrot.slane %v203, 5
      %v459 = vsel %vm452, %v457, %v458
      %v460 = vrot.slane %v204, 5
      %v461 = vrot.slane %v460, 4
      %v462 = vrot.slane %v205, 5
      %v463 = vsel %vm452, %v461, %v462
      %v464 = vrot.slane %v462, 4
      %v465 = vrot.slane %v206, 5
      %v466 = vsel %vm452, %v464, %v465
      %v467 = vrot.slane %v207, 5
      %v468 = vrot.slane %v467, 4
      %v469 = vrot.slane %v208, 5
      %v470 = vsel %vm452, %v468, %v469
      %v471 = vrot.slane %v469, 4
      %v472 = vrot.slane %v209, 5
      %v473 = vsel %vm452, %v471, %v472
      %v474 = vrot.slane %v210, 5
      %v475 = vrot.slane %v474, 4
      %v476 = vrot.slane %v211, 5
      %v477 = vsel %vm452, %v475, %v476
      %v478 = vrot.slane %v476, 4
      %v479 = vrot.slane %v212, 5
      %v480 = vsel %vm452, %v478, %v479
      %v481 = vrot.slane %v213, 5
      %v482 = vrot.slane %v481, 4
      %v483 = vrot.slane %v214, 5
      %v484 = vsel %vm452, %v482, %v483
      %v485 = vrot.slane %v483, 4
      %v486 = vrot.slane %v215, 5
      %v487 = vsel %vm452, %v485, %v486
      %v488 = vrot.slane %v216, 5
      %v489 = vrot.slane %v488, 4
      %v490 = vrot.slane %v217, 5
      %v491 = vsel %vm452, %v489, %v490
      %v492 = vrot.slane %v490, 4
      %v493 = vrot.slane %v218, 5
      %v494 = vsel %vm452, %v492, %v493
      %v495 = vrot.slane %v219, 5
      %v496 = vrot.slane %v495, 4
      %v497 = vrot.slane %v220, 5
      %v498 = vsel %vm452, %v496, %v497
      %v499 = vrot.slane %v497, 4
      %v500 = vrot.slane %v221, 5
      %v501 = vsel %vm452, %v499, %v500
      %v502 = vrot.slane %v222, 5
      %v503 = vrot.slane %v502, 4
      %v504 = vrot.slane %v223, 5
      %v505 = vsel %vm452, %v503, %v504
      %v506 = vrot.slane %v504, 4
      %v507 = vrot.slane %v224, 5
      %v508 = vsel %vm452, %v506, %v507
      %v510 = vshrl.u32 %v225, 16
      %v512 = vrot.slane %v510, 4
      %v513 = vshll.u32 %v225, 16
      %v515 = vrot.slane %v513, 5
      %v516 = vor.u32 %v512, %v515
      %v517 = vrot.slane %v516, 4
      %v519 = vshll.u32 %v226, 16
      %v521 = vrot.slane %v519, 5
      %v522 = vsel %vm233, %v517, %v521
      %v523 = vshrl.u32 %v226, 16
      %v525 = vrot.slane %v523, 4
      %v526 = vor.u32 %v525, %v521
      %v527 = vrot.slane %v526, 4
      %v529 = vshll.u32 %v227, 16
      %v531 = vrot.slane %v529, 5
      %v532 = vsel %vm233, %v527, %v531
      %v536 = vrot.slane %v225, 5
      %v537 = vrot.slane %v536, 4
      %v538 = vrot.slane %v226, 5
      %v539 = vsel %vm452, %v537, %v538
      %v540 = vrot.slane %v538, 4
      %v541 = vrot.slane %v227, 5
      %v542 = vsel %vm452, %v540, %v541
      %v544 = vshrl.u32 %v228, 16
      %v546 = vrot.slane %v544, 4
      %v547 = vshll.u32 %v228, 16
      %v549 = vrot.slane %v547, 5
      %v550 = vor.u32 %v546, %v549
      %v551 = vrot.slane %v550, 4
      %v553 = vshll.u32 %v229, 16
      %v555 = vrot.slane %v553, 5
      %v556 = vsel %vm233, %v551, %v555
      %v557 = vshrl.u32 %v229, 16
      %v559 = vrot.slane %v557, 4
      %v560 = vor.u32 %v559, %v555
      %v561 = vrot.slane %v560, 4
      %v563 = vshll.u32 %v230, 16
      %v565 = vrot.slane %v563, 5
      %v566 = vsel %vm233, %v561, %v565
      %v570 = vrot.slane %v228, 5
      %v571 = vrot.slane %v570, 4
      %v572 = vrot.slane %v229, 5
      %v573 = vsel %vm452, %v571, %v572
      %v574 = vrot.slane %v572, 4
      %v575 = vrot.slane %v230, 5
      %v576 = vsel %vm452, %v574, %v575
      %v577 = vunpack.c.l.b16 %v201
      %v578 = vunpack.c.l.b16 %v202
      %v579 = vunpack.c.l.b16 %v204
      %v580 = vunpack.c.l.b16 %v205
      %v581 = vunpack.c.l.b16 %v207
      %v582 = vunpack.c.l.b16 %v208
      %v583 = vunpack.c.l.b16 %v210
      %v584 = vunpack.c.l.b16 %v211
      %v585 = vunpack.c.l.b16 %v213
      %v586 = vunpack.c.l.b16 %v214
      %v587 = vunpack.c.l.b16 %v216
      %v588 = vunpack.c.l.b16 %v217
      %v589 = vunpack.c.l.b16 %v219
      %v590 = vunpack.c.l.b16 %v220
      %v591 = vunpack.c.l.b16 %v222
      %v592 = vunpack.c.l.b16 %v223
      %v593 = vpack.c.b16 %v578, %v577
      %v594 = vpack.c.b16 %v580, %v579
      %v595 = vpack.c.b16 %v582, %v581
      %v596 = vpack.c.b16 %v584, %v583
      %v597 = vpack.c.b16 %v586, %v585
      %v598 = vpack.c.b16 %v588, %v587
      %v599 = vpack.c.b16 %v590, %v589
      %v600 = vpack.c.b16 %v592, %v591
      %v601 = vunpack.c.l.b16 %v247
      %v602 = vunpack.c.l.b16 %v257
      %v603 = vunpack.c.l.b16 %v271
      %v604 = vunpack.c.l.b16 %v281
      %v605 = vunpack.c.l.b16 %v295
      %v606 = vunpack.c.l.b16 %v305
      %v607 = vunpack.c.l.b16 %v319
      %v608 = vunpack.c.l.b16 %v329
      %v609 = vunpack.c.l.b16 %v343
      %v610 = vunpack.c.l.b16 %v353
      %v611 = vunpack.c.l.b16 %v367
      %v612 = vunpack.c.l.b16 %v377
      %v613 = vunpack.c.l.b16 %v391
      %v614 = vunpack.c.l.b16 %v401
      %v615 = vunpack.c.l.b16 %v415
      %v616 = vunpack.c.l.b16 %v425
      %v617 = vpack.c.b16 %v602, %v601
      %v618 = vpack.c.b16 %v604, %v603
      %v619 = vpack.c.b16 %v606, %v605
      %v620 = vpack.c.b16 %v608, %v607
      %v621 = vpack.c.b16 %v610, %v609
      %v622 = vpack.c.b16 %v612, %v611
      %v623 = vpack.c.b16 %v614, %v613
      %v624 = vpack.c.b16 %v616, %v615
      %625 = vrot.lane.b32.xlu0 %v617, 64
      %v626 = vpop.permute.xlu0 %625
      %627 = vrot.lane.b32.xlu0 %v618, 64
      %v628 = vpop.permute.xlu0 %627
      %629 = vrot.lane.b32.xlu0 %v619, 64
      %v630 = vpop.permute.xlu0 %629
      %631 = vrot.lane.b32.xlu0 %v620, 64
      %v632 = vpop.permute.xlu0 %631
      %633 = vrot.lane.b32.xlu0 %v621, 64
      %v634 = vpop.permute.xlu0 %633
      %635 = vrot.lane.b32.xlu0 %v622, 64
      %v636 = vpop.permute.xlu0 %635
      %637 = vrot.lane.b32.xlu0 %v623, 64
      %v638 = vpop.permute.xlu0 %637
      %639 = vrot.lane.b32.xlu0 %v624, 64
      %v640 = vpop.permute.xlu0 %639
      %v641 = vunpack.c.l.b16 %v456
      %v642 = vunpack.c.l.b16 %v459
      %v643 = vunpack.c.l.b16 %v463
      %v644 = vunpack.c.l.b16 %v466
      %v645 = vunpack.c.l.b16 %v470
      %v646 = vunpack.c.l.b16 %v473
      %v647 = vunpack.c.l.b16 %v477
      %v648 = vunpack.c.l.b16 %v480
      %v649 = vunpack.c.l.b16 %v484
      %v650 = vunpack.c.l.b16 %v487
      %v651 = vunpack.c.l.b16 %v491
      %v652 = vunpack.c.l.b16 %v494
      %v653 = vunpack.c.l.b16 %v498
      %v654 = vunpack.c.l.b16 %v501
      %v655 = vunpack.c.l.b16 %v505
      %v656 = vunpack.c.l.b16 %v508
      %v657 = vpack.c.b16 %v642, %v641
      %v658 = vpack.c.b16 %v644, %v643
      %v659 = vpack.c.b16 %v646, %v645
      %v660 = vpack.c.b16 %v648, %v647
      %v661 = vpack.c.b16 %v650, %v649
      %v662 = vpack.c.b16 %v652, %v651
      %v663 = vpack.c.b16 %v654, %v653
      %v664 = vpack.c.b16 %v656, %v655
      %v665 = vunpack.c.l.b16 %v225
      %v666 = vunpack.c.l.b16 %v226
      %v667 = vpack.c.b16 %v666, %v665
      %668 = vrot.lane.b32.xlu0 %v594, 64
      %v669 = vpop.permute.xlu0 %668
      %670 = vrot.lane.b32.xlu0 %v595, 64
      %v671 = vpop.permute.xlu0 %670
      %672 = vrot.lane.b32.xlu0 %v596, 64
      %v673 = vpop.permute.xlu0 %672
      %674 = vrot.lane.b32.xlu0 %v597, 64
      %v675 = vpop.permute.xlu0 %674
      %676 = vrot.lane.b32.xlu0 %v598, 64
      %v677 = vpop.permute.xlu0 %676
      %678 = vrot.lane.b32.xlu0 %v599, 64
      %v679 = vpop.permute.xlu0 %678
      %680 = vrot.lane.b32.xlu0 %v600, 64
      %v681 = vpop.permute.xlu0 %680
      %682 = vrot.lane.b32.xlu0 %v667, 64
      %v683 = vpop.permute.xlu0 %682
      %v684 = vunpack.c.l.b16 %v522
      %v685 = vunpack.c.l.b16 %v532
      %v686 = vpack.c.b16 %v685, %v684
      %v687 = vunpack.c.l.b16 %v539
      %v688 = vunpack.c.l.b16 %v542
      %v689 = vpack.c.b16 %v688, %v687
      %690 = vrot.lane.b32.xlu0 %v658, 64
      %v691 = vpop.permute.xlu0 %690
      %692 = vrot.lane.b32.xlu0 %v659, 64
      %v693 = vpop.permute.xlu0 %692
      %694 = vrot.lane.b32.xlu0 %v660, 64
      %v695 = vpop.permute.xlu0 %694
      %696 = vrot.lane.b32.xlu0 %v661, 64
      %v697 = vpop.permute.xlu0 %696
      %698 = vrot.lane.b32.xlu0 %v662, 64
      %v699 = vpop.permute.xlu0 %698
      %700 = vrot.lane.b32.xlu0 %v663, 64
      %v701 = vpop.permute.xlu0 %700
      %702 = vrot.lane.b32.xlu0 %v664, 64
      %v703 = vpop.permute.xlu0 %702
      %704 = vrot.lane.b32.xlu0 %v689, 64
      %v705 = vpop.permute.xlu0 %704
      %v706 = vunpack.c.l.b16 %v228
      %v707 = vunpack.c.l.b16 %v229
      %v708 = vpack.c.b16 %v707, %v706
      %v709 = vunpack.c.l.b16 %v556
      %v710 = vunpack.c.l.b16 %v566
      %v711 = vpack.c.b16 %v710, %v709
      %712 = vrot.lane.b32.xlu0 %v686, 64
      %v713 = vpop.permute.xlu0 %712
      %714 = vrot.lane.b32.xlu0 %v711, 64
      %v715 = vpop.permute.xlu0 %714
      %v716 = vunpack.c.l.b16 %v573
      %v717 = vunpack.c.l.b16 %v576
      %v718 = vpack.c.b16 %v717, %v716
      %vm719 = vcmask 523264
      %v722 = vsel %vm719, %v593, %v626
      %v726 = vsel %vm719, %v594, %v628
      %v730 = vsel %vm719, %v595, %v630
      %v734 = vsel %vm719, %v596, %v632
      %v738 = vsel %vm719, %v597, %v634
      %v742 = vsel %vm719, %v598, %v636
      %v746 = vsel %vm719, %v599, %v638
      %v750 = vsel %vm719, %v600, %v640
      %v754 = vsel %vm719, %v657, %v669
      %v758 = vsel %vm719, %v658, %v671
      %v762 = vsel %vm719, %v659, %v673
      %v766 = vsel %vm719, %v660, %v675
      %v770 = vsel %vm719, %v661, %v677
      %v774 = vsel %vm719, %v662, %v679
      %v778 = vsel %vm719, %v663, %v681
      %v782 = vsel %vm719, %v664, %v683
      %v786 = vsel %vm719, %v618, %v691
      %v790 = vsel %vm719, %v619, %v693
      %v794 = vsel %vm719, %v620, %v695
      %v798 = vsel %vm719, %v621, %v697
      %v802 = vsel %vm719, %v622, %v699
      %v806 = vsel %vm719, %v623, %v701
      %v810 = vsel %vm719, %v624, %v703
      %v814 = vsel %vm719, %v686, %v705
      %v818 = vsel %vm719, %v667, %v713
      %v822 = vsel %vm719, %v708, %v715
      %v824 = vld [vmem:[%s1] sm:$0xff]
      %v825 = vld [vmem:[%s1 + $0x8] sm:$0xff]
      %v826 = vld [vmem:[%s1 + $0x10] sm:$0xff]
      %v827 = vld [vmem:[%s1 + $0x18] sm:$0xff]
      %v828 = vld [vmem:[%s1 + $0x20] sm:$0xff]
      %v829 = vld [vmem:[%s1 + $0x28] sm:$0xff]
      %v830 = vld [vmem:[%s1 + $0x30] sm:$0xff]
      %v831 = vld [vmem:[%s1 + $0x38] sm:$0xff]
      %v832 = vld [vmem:[%s1 + $0x40] sm:$0xff]
      %v833 = vld [vmem:[%s1 + $0x48] sm:$0xff]
      %v834 = vld [vmem:[%s1 + $0x50] sm:$0xff]
      %v835 = vld [vmem:[%s1 + $0x58] sm:$0xff]
      %v836 = vld [vmem:[%s1 + $0x60] sm:$0xff]
      %v837 = vld [vmem:[%s1 + $0x68] sm:$0xff]
      %v838 = vld [vmem:[%s1 + $0x70] sm:$0xff]
      %v839 = vld [vmem:[%s1 + $0x78] sm:$0xff]
      %v840 = vld [vmem:[%s1 + $0x80] sm:$0xff]
      %v841 = vld [vmem:[%s1 + $0x88] sm:$0xff]
      %v842 = vld [vmem:[%s1 + $0x90] sm:$0xff]
      %v843 = vld [vmem:[%s1 + $0x98] sm:$0xff]
      %v844 = vld [vmem:[%s1 + $0xa0] sm:$0xff]
      %v845 = vld [vmem:[%s1 + $0xa8] sm:$0xff]
      %v846 = vld [vmem:[%s1 + $0xb0] sm:$0xff]
      %v847 = vld [vmem:[%s1 + $0xb8] sm:$0xff]
      %v848 = vld [vmem:[%s1 + $0xc0] sm:$0xff]
      %v849 = vld [vmem:[%s1 + $0xc8] sm:$0xff]
      %v850 = vld [vmem:[%s1 + $0xd0] sm:$0xff]
      %v851 = vld [vmem:[%s1 + $0xd8] sm:$0xff]
      %v852 = vld [vmem:[%s1 + $0xe0] sm:$0xff]
      %v853 = vld [vmem:[%s1 + $0xe8] sm:$0xff]
      %v854 = vld [vmem:[%s1 + $0xf0] sm:$0xff]
      %v855 = vld [vmem:[%s1 + $0xf8] sm:$0xff]
      %v856 = vld [vmem:[%s1 + $0x100] sm:$0xff]
      %v857 = vld [vmem:[%s1 + $0x108] sm:$0xff]
      %v858 = vld [vmem:[%s1 + $0x110] sm:$0xff]
      %v859 = vld [vmem:[%s1 + $0x118] sm:$0xff]
      %v860 = vld [vmem:[%s1 + $0x120] sm:$0xff]
      %v861 = vld [vmem:[%s1 + $0x128] sm:$0xff]
      %v862 = vld [vmem:[%s1 + $0x130] sm:$0xff]
      %v863 = vld [vmem:[%s1 + $0x138] sm:$0xff]
      %v864 = vld [vmem:[%s1 + $0x140] sm:$0xff]
      %v865 = vld [vmem:[%s1 + $0x148] sm:$0xff]
      %v866 = vld [vmem:[%s1 + $0x150] sm:$0xff]
      %v867 = vld [vmem:[%s1 + $0x158] sm:$0xff]
      %v868 = vld [vmem:[%s1 + $0x160] sm:$0xff]
      %v869 = vld [vmem:[%s1 + $0x168] sm:$0xff]
      %v870 = vld [vmem:[%s1 + $0x170] sm:$0xff]
      %v871 = vld [vmem:[%s1 + $0x178] sm:$0xff]
      %v872 = vld [vmem:[%s1 + $0x180] sm:$0xff]
      %v873 = vld [vmem:[%s1 + $0x188] sm:$0xff]
      %v874 = vld [vmem:[%s1 + $0x190] sm:$0xff]
      %v875 = vld [vmem:[%s1 + $0x198] sm:$0xff]
      %v876 = vld [vmem:[%s1 + $0x1a0] sm:$0xff]
      %v877 = vld [vmem:[%s1 + $0x1a8] sm:$0xff]
      %v878 = vld [vmem:[%s1 + $0x1b0] sm:$0xff]
      %v879 = vld [vmem:[%s1 + $0x1b8] sm:$0xff]
      %v880 = vld [vmem:[%s1 + $0x1c0] sm:$0xff]
      %v881 = vld [vmem:[%s1 + $0x1c8] sm:$0xff]
      %v882 = vld [vmem:[%s1 + $0x1d0] sm:$0xff]
      %v883 = vld [vmem:[%s1 + $0x1d8] sm:$0xff]
      %v884 = vld [vmem:[%s1 + $0x1e0] sm:$0xff]
      %v885 = vld [vmem:[%s1 + $0x1e8] sm:$0xff]
      %v886 = vld [vmem:[%s1 + $0x1f0] sm:$0xff]
      %v887 = vld [vmem:[%s1 + $0x1f8] sm:$0xff]
      %v888 = vld [vmem:[%s1 + $0x200] sm:$0xff]
      %v889 = vld [vmem:[%s1 + $0x208] sm:$0xff]
      %v890 = vld [vmem:[%s1 + $0x210] sm:$0xff]
      %v891 = vld [vmem:[%s1 + $0x218] sm:$0xff]
      %v892 = vld [vmem:[%s1 + $0x220] sm:$0xff]
      %v893 = vld [vmem:[%s1 + $0x228] sm:$0xff]
      %v894 = vld [vmem:[%s1 + $0x230] sm:$0xff]
      %v895 = vld [vmem:[%s1 + $0x238] sm:$0xff]
      %v896 = vld [vmem:[%s2] sm:$0x3]
      %v898 = vlaneseq
      %v899 = vshrl.u32 %v898, 7
      %v900 = vsub.s32 0, %v899
      %v901 = vrot.slane %v896, %v900
      %v902 = vlaneseq
      %v903 = vshrl.u32 %v902, 7
      %v904 = vsub.s32 1, %v903
      %v905 = vrot.slane %v896, %v904
      %v980 = vunpack.c.l.b16 %v824
      %v981 = vunpack.c.h.b16 %v824
      %v982 = vunpack.c.l.b16 %v825
      %v983 = vunpack.c.h.b16 %v825
      %v984 = vunpack.c.l.b16 %v826
      %v985 = vunpack.c.h.b16 %v826
      %v986 = vunpack.c.l.b16 %v827
      %v987 = vunpack.c.h.b16 %v827
      %v988 = vunpack.c.l.b16 %v828
      %v989 = vunpack.c.h.b16 %v828
      %v990 = vunpack.c.l.b16 %v829
      %v991 = vunpack.c.h.b16 %v829
      %v992 = vunpack.c.l.b16 %v830
      %v993 = vunpack.c.h.b16 %v830
      %v994 = vunpack.c.l.b16 %v831
      %v995 = vunpack.c.h.b16 %v831
      %v996 = vunpack.c.l.b16 %v832
      %v997 = vunpack.c.h.b16 %v832
      %v998 = vunpack.c.l.b16 %v833
      %v999 = vunpack.c.h.b16 %v833
      %v1000 = vunpack.c.l.b16 %v834
      %v1001 = vunpack.c.h.b16 %v834
      %v1002 = vunpack.c.l.b16 %v835
      %v1003 = vunpack.c.h.b16 %v835
      %v1004 = vunpack.c.l.b16 %v836
      %v1005 = vunpack.c.h.b16 %v836
      %v1006 = vunpack.c.l.b16 %v837
      %v1007 = vunpack.c.h.b16 %v837
      %v1008 = vunpack.c.l.b16 %v838
      %v1009 = vunpack.c.h.b16 %v838
      %v1010 = vunpack.c.l.b16 %v839
      %v1011 = vunpack.c.h.b16 %v839
      %v1012 = vunpack.c.l.b16 %v840
      %v1013 = vunpack.c.h.b16 %v840
      %v1014 = vunpack.c.l.b16 %v841
      %v1015 = vunpack.c.h.b16 %v841
      %v1016 = vunpack.c.l.b16 %v842
      %v1017 = vunpack.c.h.b16 %v842
      %v1018 = vunpack.c.l.b16 %v843
      %v1019 = vunpack.c.h.b16 %v843
      %v1020 = vunpack.c.l.b16 %v844
      %v1021 = vunpack.c.h.b16 %v844
      %v1022 = vunpack.c.l.b16 %v845
      %v1023 = vunpack.c.h.b16 %v845
      %v1024 = vunpack.c.l.b16 %v846
      %v1025 = vunpack.c.h.b16 %v846
      %v1026 = vunpack.c.l.b16 %v847
      %v1027 = vunpack.c.h.b16 %v847
      %v1028 = vunpack.c.l.b16 %v848
      %v1029 = vunpack.c.h.b16 %v848
      %v1030 = vunpack.c.l.b16 %v849
      %v1031 = vunpack.c.h.b16 %v849
      %v1032 = vunpack.c.l.b16 %v850
      %v1033 = vunpack.c.h.b16 %v850
      %v1034 = vunpack.c.l.b16 %v851
      %v1035 = vunpack.c.h.b16 %v851
      %v1036 = vunpack.c.l.b16 %v852
      %v1037 = vunpack.c.h.b16 %v852
      %v1038 = vunpack.c.l.b16 %v853
      %v1039 = vunpack.c.h.b16 %v853
      %v1040 = vunpack.c.l.b16 %v854
      %v1041 = vunpack.c.h.b16 %v854
      %v1042 = vunpack.c.l.b16 %v855
      %v1043 = vunpack.c.h.b16 %v855
      %v1044 = vunpack.c.l.b16 %v856
      %v1045 = vunpack.c.h.b16 %v856
      %v1046 = vunpack.c.l.b16 %v857
      %v1047 = vunpack.c.h.b16 %v857
      %v1048 = vunpack.c.l.b16 %v858
      %v1049 = vunpack.c.h.b16 %v858
      %v1050 = vunpack.c.l.b16 %v859
      %v1051 = vunpack.c.h.b16 %v859
      %v1052 = vunpack.c.l.b16 %v860
      %v1053 = vunpack.c.h.b16 %v860
      %v1054 = vunpack.c.l.b16 %v861
      %v1055 = vunpack.c.h.b16 %v861
      %v1056 = vunpack.c.l.b16 %v862
      %v1057 = vunpack.c.h.b16 %v862
      %v1058 = vunpack.c.l.b16 %v863
      %v1059 = vunpack.c.h.b16 %v863
      %v1060 = vunpack.c.l.b16 %v864
      %v1061 = vunpack.c.h.b16 %v864
      %v1062 = vunpack.c.l.b16 %v865
      %v1063 = vunpack.c.h.b16 %v865
      %v1064 = vunpack.c.l.b16 %v866
      %v1065 = vunpack.c.h.b16 %v866
      %v1066 = vunpack.c.l.b16 %v867
      %v1067 = vunpack.c.h.b16 %v867
      %v1068 = vunpack.c.l.b16 %v868
      %v1069 = vunpack.c.h.b16 %v868
      %v1070 = vunpack.c.l.b16 %v869
      %v1071 = vunpack.c.h.b16 %v869
      %v1072 = vunpack.c.l.b16 %v870
      %v1073 = vunpack.c.h.b16 %v870
      %v1074 = vunpack.c.l.b16 %v871
      %v1075 = vunpack.c.h.b16 %v871
      %v1076 = vunpack.c.l.b16 %v872
      %v1077 = vunpack.c.h.b16 %v872
      %v1078 = vunpack.c.l.b16 %v873
      %v1079 = vunpack.c.h.b16 %v873
      %v1080 = vunpack.c.l.b16 %v874
      %v1081 = vunpack.c.h.b16 %v874
      %v1082 = vunpack.c.l.b16 %v875
      %v1083 = vunpack.c.h.b16 %v875
      %v1084 = vunpack.c.l.b16 %v876
      %v1085 = vunpack.c.h.b16 %v876
      %v1086 = vunpack.c.l.b16 %v877
      %v1087 = vunpack.c.h.b16 %v877
      %v1088 = vunpack.c.l.b16 %v878
      %v1089 = vunpack.c.h.b16 %v878
      %v1090 = vunpack.c.l.b16 %v879
      %v1091 = vunpack.c.h.b16 %v879
      %v1092 = vunpack.c.l.b16 %v880
      %v1093 = vunpack.c.h.b16 %v880
      %v1094 = vunpack.c.l.b16 %v881
      %v1095 = vunpack.c.h.b16 %v881
      %v1096 = vunpack.c.l.b16 %v882
      %v1097 = vunpack.c.h.b16 %v882
      %v1098 = vunpack.c.l.b16 %v883
      %v1099 = vunpack.c.h.b16 %v883
      %v1100 = vunpack.c.l.b16 %v884
      %v1101 = vunpack.c.h.b16 %v884
      %v1102 = vunpack.c.l.b16 %v885
      %v1103 = vunpack.c.h.b16 %v885
      %v1104 = vunpack.c.l.b16 %v886
      %v1105 = vunpack.c.h.b16 %v886
      %v1106 = vunpack.c.l.b16 %v887
      %v1107 = vunpack.c.h.b16 %v887
      %v1108 = vunpack.c.l.b16 %v888
      %v1109 = vunpack.c.h.b16 %v888
      %v1110 = vunpack.c.l.b16 %v889
      %v1111 = vunpack.c.h.b16 %v889
      %v1112 = vunpack.c.l.b16 %v890
      %v1113 = vunpack.c.h.b16 %v890
      %v1114 = vunpack.c.l.b16 %v891
      %v1115 = vunpack.c.h.b16 %v891
      %v1116 = vunpack.c.l.b16 %v892
      %v1117 = vunpack.c.h.b16 %v892
      %v1118 = vunpack.c.l.b16 %v893
      %v1119 = vunpack.c.h.b16 %v893
      %v1120 = vunpack.c.l.b16 %v894
      %v1121 = vunpack.c.h.b16 %v894
      %v1122 = vunpack.c.l.b16 %v895
      %v1123 = vunpack.c.h.b16 %v895
      %v1124 = vpack.c.b16 %v982, %v980
      %v1125 = vpack.c.b16 %v983, %v981
      %v1126 = vpack.c.b16 %v986, %v984
      %v1127 = vpack.c.b16 %v987, %v985
      %v1128 = vpack.c.b16 %v990, %v988
      %v1129 = vpack.c.b16 %v991, %v989
      %v1130 = vpack.c.b16 %v994, %v992
      %v1131 = vpack.c.b16 %v995, %v993
      %v1132 = vpack.c.b16 %v998, %v996
      %v1133 = vpack.c.b16 %v999, %v997
      %v1134 = vpack.c.b16 %v1002, %v1000
      %v1135 = vpack.c.b16 %v1003, %v1001
      %v1136 = vpack.c.b16 %v1006, %v1004
      %v1137 = vpack.c.b16 %v1007, %v1005
      %v1138 = vpack.c.b16 %v1010, %v1008
      %v1139 = vpack.c.b16 %v1011, %v1009
      %v1140 = vpack.c.b16 %v1014, %v1012
      %v1141 = vpack.c.b16 %v1015, %v1013
      %v1142 = vpack.c.b16 %v1018, %v1016
      %v1143 = vpack.c.b16 %v1019, %v1017
      %v1144 = vpack.c.b16 %v1022, %v1020
      %v1145 = vpack.c.b16 %v1023, %v1021
      %v1146 = vpack.c.b16 %v1026, %v1024
      %v1147 = vpack.c.b16 %v1027, %v1025
      %v1148 = vpack.c.b16 %v1030, %v1028
      %v1149 = vpack.c.b16 %v1031, %v1029
      %v1150 = vpack.c.b16 %v1034, %v1032
      %v1151 = vpack.c.b16 %v1035, %v1033
      %v1152 = vpack.c.b16 %v1038, %v1036
      %v1153 = vpack.c.b16 %v1039, %v1037
      %v1154 = vpack.c.b16 %v1042, %v1040
      %v1155 = vpack.c.b16 %v1043, %v1041
      %v1156 = vpack.c.b16 %v1046, %v1044
      %v1157 = vpack.c.b16 %v1047, %v1045
      %v1158 = vpack.c.b16 %v1050, %v1048
      %v1159 = vpack.c.b16 %v1051, %v1049
      %v1160 = vpack.c.b16 %v1054, %v1052
      %v1161 = vpack.c.b16 %v1055, %v1053
      %v1162 = vpack.c.b16 %v1058, %v1056
      %v1163 = vpack.c.b16 %v1059, %v1057
      %v1164 = vpack.c.b16 %v1062, %v1060
      %v1165 = vpack.c.b16 %v1063, %v1061
      %v1166 = vpack.c.b16 %v1066, %v1064
      %v1167 = vpack.c.b16 %v1067, %v1065
      %v1168 = vpack.c.b16 %v1070, %v1068
      %v1169 = vpack.c.b16 %v1071, %v1069
      %v1170 = vpack.c.b16 %v1074, %v1072
      %v1171 = vpack.c.b16 %v1075, %v1073
      %v1172 = vpack.c.b16 %v1078, %v1076
      %v1173 = vpack.c.b16 %v1079, %v1077
      %v1174 = vpack.c.b16 %v1082, %v1080
      %v1175 = vpack.c.b16 %v1083, %v1081
      %v1176 = vpack.c.b16 %v1086, %v1084
      %v1177 = vpack.c.b16 %v1087, %v1085
      %v1178 = vpack.c.b16 %v1090, %v1088
      %v1179 = vpack.c.b16 %v1091, %v1089
      %v1180 = vpack.c.b16 %v1094, %v1092
      %v1181 = vpack.c.b16 %v1095, %v1093
      %v1182 = vpack.c.b16 %v1098, %v1096
      %v1183 = vpack.c.b16 %v1099, %v1097
      %v1184 = vpack.c.b16 %v1102, %v1100
      %v1185 = vpack.c.b16 %v1103, %v1101
      %v1186 = vpack.c.b16 %v1106, %v1104
      %v1187 = vpack.c.b16 %v1107, %v1105
      %v1188 = vpack.c.b16 %v1110, %v1108
      %v1189 = vpack.c.b16 %v1111, %v1109
      %v1190 = vpack.c.b16 %v1114, %v1112
      %v1191 = vpack.c.b16 %v1115, %v1113
      %v1192 = vpack.c.b16 %v1118, %v1116
      %v1193 = vpack.c.b16 %v1119, %v1117
      %v1194 = vpack.c.b16 %v1122, %v1120
      %v1195 = vpack.c.b16 %v1123, %v1121
      %v1268 = vsel %vm719, %v659, 0
      %v1270 = vsel %vm719, %v660, 0
      %v1272 = vsel %vm719, %v661, 0
      %v1274 = vsel %vm719, %v662, 0
      %v1276 = vsel %vm719, %v663, 0
      %v1278 = vsel %vm719, %v664, 0
      %v1281 = vsel %vm719, %v689, 0
      %v1284 = vsel %vm719, %v718, 0
      %1286 = vmatprep.subr.bf16.mxu0 %v1125
      %1287 = vmatpush1.bf16.msra.mxu0 %v1124
      %1288 = vmatprep.subr.bf16.mxu0 %v1127
      %1289 = vmatpush1.bf16.msra.mxu0 %v1126
      %1290 = vmatprep.subr.bf16.mxu0 %v1129
      %1291 = vmatpush1.bf16.msra.mxu0 %v1128
      %1292 = vmatprep.subr.bf16.mxu0 %v1131
      %1293 = vmatpush1.bf16.msra.mxu0 %v1130
      %1294 = vmatprep.subr.bf16.mxu0 %v1133
      %1295 = vmatpush1.bf16.msra.mxu0 %v1132
      %1296 = vmatprep.subr.bf16.mxu0 %v1135
      %1297 = vmatpush1.bf16.msra.mxu0 %v1134
      %1298 = vmatprep.subr.bf16.mxu0 %v1137
      %1299 = vmatpush1.bf16.msra.mxu0 %v1136
      %1300 = vmatprep.subr.bf16.mxu0 %v1139
      %1301 = vmatpush1.bf16.msra.mxu0 %v1138
      %1302 = vmatprep.subr.bf16.mxu0 %v1141
      %1303 = vmatpush1.bf16.msra.mxu0 %v1140
      %1304 = vmatprep.subr.bf16.mxu0 %v1143
      %1305 = vmatpush1.bf16.msra.mxu0 %v1142
      %1306 = vmatprep.subr.bf16.mxu0 %v1145
      %1307 = vmatpush1.bf16.msra.mxu0 %v1144
      %1308 = vmatprep.subr.bf16.mxu0 %v1147
      %1309 = vmatpush1.bf16.msra.mxu0 %v1146
      %1310 = vmatprep.subr.bf16.mxu0 %v1149
      %1311 = vmatpush1.bf16.msra.mxu0 %v1148
      %1312 = vmatprep.subr.bf16.mxu0 %v1151
      %1313 = vmatpush1.bf16.msra.mxu0 %v1150
      %1314 = vmatprep.subr.bf16.mxu0 %v1153
      %1315 = vmatpush1.bf16.msra.mxu0 %v1152
      %1316 = vmatprep.subr.bf16.mxu0 %v1155
      %1317 = vmatpush1.bf16.msra.mxu0 %v1154
      %1318 = vmatprep.mubr.bf16.mxu0 %v754
      %1319 = vmatmul.mubr.bf16.gmra.mrb[0].mxu0 %v722
      %v1320 = vpop.f32.mrb[0].mxu0
      %v1321 = vadd.f32 %v901, %v1320
      %v1322 = vpop.f32.mrb[0].mxu0
      %v1323 = vadd.f32 %v905, %v1322
      %v1324 = vpop.f32.mrb[0].mxu0
      %v1325 = vadd.f32 %v901, %v1324
      %v1326 = vpop.f32.mrb[0].mxu0
      %v1327 = vadd.f32 %v905, %v1326
      %1328 = vmatprep.mubr.bf16.mxu0 %v758
      %1329 = vmatmul.mubr.bf16.gmra.mrb[0].mxu0 %v726
      %v1330 = vpop.f32.mrb[0].mxu0
      %v1331 = vadd.f32 %v901, %v1330
      %v1332 = vpop.f32.mrb[0].mxu0
      %v1333 = vadd.f32 %v905, %v1332
      %v1334 = vpop.f32.mrb[0].mxu0
      %v1335 = vadd.f32 %v901, %v1334
      %v1336 = vpop.f32.mrb[0].mxu0
      %v1337 = vadd.f32 %v905, %v1336
      %1338 = vmatprep.mubr.bf16.mxu0 %v762
      %1339 = vmatmul.mubr.bf16.gmra.mrb[0].mxu0 %v730
      %v1340 = vpop.f32.mrb[0].mxu0
      %v1341 = vadd.f32 %v901, %v1340
      %v1342 = vpop.f32.mrb[0].mxu0
      %v1343 = vadd.f32 %v905, %v1342
      %v1344 = vpop.f32.mrb[0].mxu0
      %v1345 = vadd.f32 %v901, %v1344
      %v1346 = vpop.f32.mrb[0].mxu0
      %v1347 = vadd.f32 %v905, %v1346
      %1348 = vmatprep.mubr.bf16.mxu0 %v766
      %1349 = vmatmul.mubr.bf16.gmra.mrb[0].mxu0 %v734
      %v1350 = vpop.f32.mrb[0].mxu0
      %v1351 = vadd.f32 %v901, %v1350
      %v1352 = vpop.f32.mrb[0].mxu0
      %v1353 = vadd.f32 %v905, %v1352
      %v1354 = vpop.f32.mrb[0].mxu0
      %v1355 = vadd.f32 %v901, %v1354
      %v1356 = vpop.f32.mrb[0].mxu0
      %v1357 = vadd.f32 %v905, %v1356
      %1358 = vmatprep.mubr.bf16.mxu0 %v770
      %1359 = vmatmul.mubr.bf16.gmra.mrb[0].mxu0 %v738
      %v1360 = vpop.f32.mrb[0].mxu0
      %v1361 = vadd.f32 %v901, %v1360
      %v1362 = vpop.f32.mrb[0].mxu0
      %v1363 = vadd.f32 %v905, %v1362
      %v1364 = vpop.f32.mrb[0].mxu0
      %v1365 = vadd.f32 %v901, %v1364
      %v1366 = vpop.f32.mrb[0].mxu0
      %v1367 = vadd.f32 %v905, %v1366
      %1368 = vmatprep.mubr.bf16.mxu0 %v774
      %1369 = vmatmul.mubr.bf16.gmra.mrb[0].mxu0 %v742
      %v1370 = vpop.f32.mrb[0].mxu0
      %v1371 = vadd.f32 %v901, %v1370
      %v1372 = vpop.f32.mrb[0].mxu0
      %v1373 = vadd.f32 %v905, %v1372
      %v1374 = vpop.f32.mrb[0].mxu0
      %v1375 = vadd.f32 %v901, %v1374
      %v1376 = vpop.f32.mrb[0].mxu0
      %v1377 = vadd.f32 %v905, %v1376
      %1378 = vmatprep.mubr.bf16.mxu0 %v778
      %1379 = vmatmul.mubr.bf16.gmra.mrb[0].mxu0 %v746
      %v1380 = vpop.f32.mrb[0].mxu0
      %v1381 = vadd.f32 %v901, %v1380
      %v1382 = vpop.f32.mrb[0].mxu0
      %v1383 = vadd.f32 %v905, %v1382
      %v1384 = vpop.f32.mrb[0].mxu0
      %v1385 = vadd.f32 %v901, %v1384
      %v1386 = vpop.f32.mrb[0].mxu0
      %v1387 = vadd.f32 %v905, %v1386
      %1388 = vmatprep.mubr.bf16.mxu0 %v782
      %1389 = vmatmul.mubr.bf16.gmra.mrb[0].mxu0 %v750
      %v1390 = vpop.f32.mrb[0].mxu0
      %v1391 = vadd.f32 %v901, %v1390
      %v1392 = vpop.f32.mrb[0].mxu0
      %v1393 = vadd.f32 %v905, %v1392
      %v1394 = vpop.f32.mrb[0].mxu0
      %v1395 = vadd.f32 %v901, %v1394
      %v1396 = vpop.f32.mrb[0].mxu0
      %v1397 = vadd.f32 %v905, %v1396
      %1398 = vdwg.mxu0
      %1399 = vmatprep.subr.bf16.mxu0 %v1157
      %1400 = vmatpush1.bf16.msra.mxu0 %v1156
      %1401 = vmatprep.subr.bf16.mxu0 %v1159
      %1402 = vmatpush1.bf16.msra.mxu0 %v1158
      %1403 = vmatprep.subr.bf16.mxu0 %v1161
      %1404 = vmatpush1.bf16.msra.mxu0 %v1160
      %1405 = vmatprep.subr.bf16.mxu0 %v1163
      %1406 = vmatpush1.bf16.msra.mxu0 %v1162
      %1407 = vmatprep.subr.bf16.mxu0 %v1165
      %1408 = vmatpush1.bf16.msra.mxu0 %v1164
      %1409 = vmatprep.subr.bf16.mxu0 %v1167
      %1410 = vmatpush1.bf16.msra.mxu0 %v1166
      %1411 = vmatprep.subr.bf16.mxu0 %v1169
      %1412 = vmatpush1.bf16.msra.mxu0 %v1168
      %1413 = vmatprep.subr.bf16.mxu0 %v1171
      %1414 = vmatpush1.bf16.msra.mxu0 %v1170
      %1415 = vmatprep.subr.bf16.mxu0 %v1173
      %1416 = vmatpush1.bf16.msra.mxu0 %v1172
      %1417 = vmatprep.subr.bf16.mxu0 %v1175
      %1418 = vmatpush1.bf16.msra.mxu0 %v1174
      %1419 = vmatprep.subr.bf16.mxu0 %v1177
      %1420 = vmatpush1.bf16.msra.mxu0 %v1176
      %1421 = vmatprep.subr.bf16.mxu0 %v1179
      %1422 = vmatpush1.bf16.msra.mxu0 %v1178
      %1423 = vmatprep.subr.bf16.mxu0 %v1181
      %1424 = vmatpush1.bf16.msra.mxu0 %v1180
      %1425 = vmatprep.subr.bf16.mxu0 %v1183
      %1426 = vmatpush1.bf16.msra.mxu0 %v1182
      %1427 = vmatprep.subr.bf16.mxu0 %v1185
      %1428 = vmatpush1.bf16.msra.mxu0 %v1184
      %1429 = vmatprep.subr.bf16.mxu0 %v1187
      %1430 = vmatpush1.bf16.msra.mxu0 %v1186
      %1431 = vmatprep.mubr.bf16.mxu0 %v730
      %1432 = vmatmul.mubr.bf16.gmra.mrb[0].mxu0 %v786
      %v1433 = vpop.f32.mrb[0].mxu0
      %v1434 = vadd.f32 %v1321, %v1433
      %v1435 = vpop.f32.mrb[0].mxu0
      %v1436 = vadd.f32 %v1323, %v1435
      %v1437 = vpop.f32.mrb[0].mxu0
      %v1438 = vadd.f32 %v1325, %v1437
      %v1439 = vpop.f32.mrb[0].mxu0
      %v1440 = vadd.f32 %v1327, %v1439
      %1441 = vmatprep.mubr.bf16.mxu0 %v734
      %1442 = vmatmul.mubr.bf16.gmra.mrb[0].mxu0 %v790
      %v1443 = vpop.f32.mrb[0].mxu0
      %v1444 = vadd.f32 %v1331, %v1443
      %v1445 = vpop.f32.mrb[0].mxu0
      %v1446 = vadd.f32 %v1333, %v1445
      %v1447 = vpop.f32.mrb[0].mxu0
      %v1448 = vadd.f32 %v1335, %v1447
      %v1449 = vpop.f32.mrb[0].mxu0
      %v1450 = vadd.f32 %v1337, %v1449
      %1451 = vmatprep.mubr.bf16.mxu0 %v738
      %1452 = vmatmul.mubr.bf16.gmra.mrb[0].mxu0 %v794
      %v1453 = vpop.f32.mrb[0].mxu0
      %v1454 = vadd.f32 %v1341, %v1453
      %v1455 = vpop.f32.mrb[0].mxu0
      %v1456 = vadd.f32 %v1343, %v1455
      %v1457 = vpop.f32.mrb[0].mxu0
      %v1458 = vadd.f32 %v1345, %v1457
      %v1459 = vpop.f32.mrb[0].mxu0
      %v1460 = vadd.f32 %v1347, %v1459
      %1461 = vmatprep.mubr.bf16.mxu0 %v742
      %1462 = vmatmul.mubr.bf16.gmra.mrb[0].mxu0 %v798
      %v1463 = vpop.f32.mrb[0].mxu0
      %v1464 = vadd.f32 %v1351, %v1463
      %v1465 = vpop.f32.mrb[0].mxu0
      %v1466 = vadd.f32 %v1353, %v1465
      %v1467 = vpop.f32.mrb[0].mxu0
      %v1468 = vadd.f32 %v1355, %v1467
      %v1469 = vpop.f32.mrb[0].mxu0
      %v1470 = vadd.f32 %v1357, %v1469
      %1471 = vmatprep.mubr.bf16.mxu0 %v746
      %1472 = vmatmul.mubr.bf16.gmra.mrb[0].mxu0 %v802
      %v1473 = vpop.f32.mrb[0].mxu0
      %v1474 = vadd.f32 %v1361, %v1473
      %v1475 = vpop.f32.mrb[0].mxu0
      %v1476 = vadd.f32 %v1363, %v1475
      %v1477 = vpop.f32.mrb[0].mxu0
      %v1478 = vadd.f32 %v1365, %v1477
      %v1479 = vpop.f32.mrb[0].mxu0
      %v1480 = vadd.f32 %v1367, %v1479
      %1481 = vmatprep.mubr.bf16.mxu0 %v750
      %1482 = vmatmul.mubr.bf16.gmra.mrb[0].mxu0 %v806
      %v1483 = vpop.f32.mrb[0].mxu0
      %v1484 = vadd.f32 %v1371, %v1483
      %v1485 = vpop.f32.mrb[0].mxu0
      %v1486 = vadd.f32 %v1373, %v1485
      %v1487 = vpop.f32.mrb[0].mxu0
      %v1488 = vadd.f32 %v1375, %v1487
      %v1489 = vpop.f32.mrb[0].mxu0
      %v1490 = vadd.f32 %v1377, %v1489
      %1491 = vmatprep.mubr.bf16.mxu0 %v818
      %1492 = vmatmul.mubr.bf16.gmra.mrb[0].mxu0 %v810
      %v1493 = vpop.f32.mrb[0].mxu0
      %v1494 = vadd.f32 %v1381, %v1493
      %v1495 = vpop.f32.mrb[0].mxu0
      %v1496 = vadd.f32 %v1383, %v1495
      %v1497 = vpop.f32.mrb[0].mxu0
      %v1498 = vadd.f32 %v1385, %v1497
      %v1499 = vpop.f32.mrb[0].mxu0
      %v1500 = vadd.f32 %v1387, %v1499
      %1501 = vmatprep.mubr.bf16.mxu0 %v822
      %1502 = vmatmul.mubr.bf16.gmra.mrb[0].mxu0 %v814
      %v1503 = vpop.f32.mrb[0].mxu0
      %v1504 = vadd.f32 %v1391, %v1503
      %v1505 = vpop.f32.mrb[0].mxu0
      %v1506 = vadd.f32 %v1393, %v1505
      %v1507 = vpop.f32.mrb[0].mxu0
      %v1508 = vadd.f32 %v1395, %v1507
      %v1509 = vpop.f32.mrb[0].mxu0
      %v1510 = vadd.f32 %v1397, %v1509
      %1511 = vdwg.mxu0
      %1512 = vmatprep.subr.bf16.mxu0 %v1189
      %1513 = vmatpush1.bf16.msra.mxu0 %v1188
      %1514 = vmatprep.subr.bf16.mxu0 %v1191
      %1515 = vmatpush1.bf16.msra.mxu0 %v1190
      %1516 = vmatprep.subr.bf16.mxu0 %v1193
      %1517 = vmatpush1.bf16.msra.mxu0 %v1192
      %1518 = vmatprep.subr.bf16.mxu0 %v1195
      %1519 = vmatpush1.bf16.msra.mxu0 %v1194
      %1520 = vmatprep.subr.bf16.mxu0 0
      %1521 = vmatpush1.bf16.msra.mxu0 0
      %1522 = vmatprep.subr.bf16.mxu0 0
      %1523 = vmatpush1.bf16.msra.mxu0 0
      %1524 = vmatprep.subr.bf16.mxu0 0
      %1525 = vmatpush1.bf16.msra.mxu0 0
      %1526 = vmatprep.subr.bf16.mxu0 0
      %1527 = vmatpush1.bf16.msra.mxu0 0
      %1528 = vmatprep.subr.bf16.mxu0 0
      %1529 = vmatpush1.bf16.msra.mxu0 0
      %1530 = vmatprep.subr.bf16.mxu0 0
      %1531 = vmatpush1.bf16.msra.mxu0 0
      %1532 = vmatprep.subr.bf16.mxu0 0
      %1533 = vmatpush1.bf16.msra.mxu0 0
      %1534 = vmatprep.subr.bf16.mxu0 0
      %1535 = vmatpush1.bf16.msra.mxu0 0
      %1536 = vmatprep.subr.bf16.mxu0 0
      %1537 = vmatpush1.bf16.msra.mxu0 0
      %1538 = vmatprep.subr.bf16.mxu0 0
      %1539 = vmatpush1.bf16.msra.mxu0 0
      %1540 = vmatprep.subr.bf16.mxu0 0
      %1541 = vmatpush1.bf16.msra.mxu0 0
      %1542 = vmatprep.subr.bf16.mxu0 0
      %1543 = vmatpush1.bf16.msra.mxu0 0
      %1544 = vmatprep.mubr.bf16.mxu0 0
      %1545 = vmatmul.mubr.bf16.gmra.mrb[0].mxu0 %v1268
      %v1546 = vpop.f32.mrb[0].mxu0
      %v1547 = vadd.f32 %v1434, %v1546
      %v1548 = vpop.f32.mrb[0].mxu0
      %v1549 = vadd.f32 %v1436, %v1548
      %v1550 = vpop.f32.mrb[0].mxu0
      %v1551 = vadd.f32 %v1438, %v1550
      %v1552 = vpop.f32.mrb[0].mxu0
      %v1553 = vadd.f32 %v1440, %v1552
      %1554 = vmatprep.mubr.bf16.mxu0 0
      %1555 = vmatmul.mubr.bf16.gmra.mrb[0].mxu0 %v1270
      %v1556 = vpop.f32.mrb[0].mxu0
      %v1557 = vadd.f32 %v1444, %v1556
      %v1558 = vpop.f32.mrb[0].mxu0
      %v1559 = vadd.f32 %v1446, %v1558
      %v1560 = vpop.f32.mrb[0].mxu0
      %v1561 = vadd.f32 %v1448, %v1560
      %v1562 = vpop.f32.mrb[0].mxu0
      %v1563 = vadd.f32 %v1450, %v1562
      %1564 = vmatprep.mubr.bf16.mxu0 0
      %1565 = vmatmul.mubr.bf16.gmra.mrb[0].mxu0 %v1272
      %v1566 = vpop.f32.mrb[0].mxu0
      %v1567 = vadd.f32 %v1454, %v1566
      %v1568 = vpop.f32.mrb[0].mxu0
      %v1569 = vadd.f32 %v1456, %v1568
      %v1570 = vpop.f32.mrb[0].mxu0
      %v1571 = vadd.f32 %v1458, %v1570
      %v1572 = vpop.f32.mrb[0].mxu0
      %v1573 = vadd.f32 %v1460, %v1572
      %1574 = vmatprep.mubr.bf16.mxu0 0
      %1575 = vmatmul.mubr.bf16.gmra.mrb[0].mxu0 %v1274
      %v1576 = vpop.f32.mrb[0].mxu0
      %v1577 = vadd.f32 %v1464, %v1576
      %v1578 = vpop.f32.mrb[0].mxu0
      %v1579 = vadd.f32 %v1466, %v1578
      %v1580 = vpop.f32.mrb[0].mxu0
      %v1581 = vadd.f32 %v1468, %v1580
      %v1582 = vpop.f32.mrb[0].mxu0
      %v1583 = vadd.f32 %v1470, %v1582
      %1584 = vmatprep.mubr.bf16.mxu0 0
      %1585 = vmatmul.mubr.bf16.gmra.mrb[0].mxu0 %v1276
      %v1586 = vpop.f32.mrb[0].mxu0
      %v1587 = vadd.f32 %v1474, %v1586
      %v1588 = vpop.f32.mrb[0].mxu0
      %v1589 = vadd.f32 %v1476, %v1588
      %v1590 = vpop.f32.mrb[0].mxu0
      %v1591 = vadd.f32 %v1478, %v1590
      %v1592 = vpop.f32.mrb[0].mxu0
      %v1593 = vadd.f32 %v1480, %v1592
      %1594 = vmatprep.mubr.bf16.mxu0 0
      %1595 = vmatmul.mubr.bf16.gmra.mrb[0].mxu0 %v1278
      %v1596 = vpop.f32.mrb[0].mxu0
      %v1597 = vadd.f32 %v1484, %v1596
      %v1598 = vpop.f32.mrb[0].mxu0
      %v1599 = vadd.f32 %v1486, %v1598
      %v1600 = vpop.f32.mrb[0].mxu0
      %v1601 = vadd.f32 %v1488, %v1600
      %v1602 = vpop.f32.mrb[0].mxu0
      %v1603 = vadd.f32 %v1490, %v1602
      %1604 = vmatprep.mubr.bf16.mxu0 0
      %1605 = vmatmul.mubr.bf16.gmra.mrb[0].mxu0 %v1281
      %v1606 = vpop.f32.mrb[0].mxu0
      %v1607 = vadd.f32 %v1494, %v1606
      %v1608 = vpop.f32.mrb[0].mxu0
      %v1609 = vadd.f32 %v1496, %v1608
      %v1610 = vpop.f32.mrb[0].mxu0
      %v1611 = vadd.f32 %v1498, %v1610
      %v1612 = vpop.f32.mrb[0].mxu0
      %v1613 = vadd.f32 %v1500, %v1612
      %1614 = vmatprep.mubr.bf16.mxu0 0
      %1615 = vmatmul.mubr.bf16.gmra.mrb[0].mxu0 %v1284
      %v1616 = vpop.f32.mrb[0].mxu0
      %v1617 = vadd.f32 %v1504, %v1616
      %v1618 = vpop.f32.mrb[0].mxu0
      %v1619 = vadd.f32 %v1506, %v1618
      %v1620 = vpop.f32.mrb[0].mxu0
      %v1621 = vadd.f32 %v1508, %v1620
      %v1622 = vpop.f32.mrb[0].mxu0
      %v1623 = vadd.f32 %v1510, %v1622
      %1624 = vdwg.mxu0
      %1625 = vst [vmem:[%s194] sm:$0xff] %v1547
      %1626 = vst [vmem:[%s194 + $0x8] sm:$0xff] %v1551
      %1627 = vst [vmem:[%s194 + $0x20] sm:$0xff] %v1557
      %1628 = vst [vmem:[%s194 + $0x28] sm:$0xff] %v1561
      %1629 = vst [vmem:[%s194 + $0x40] sm:$0xff] %v1567
      %1630 = vst [vmem:[%s194 + $0x48] sm:$0xff] %v1571
      %1631 = vst [vmem:[%s194 + $0x60] sm:$0xff] %v1577
      %1632 = vst [vmem:[%s194 + $0x68] sm:$0xff] %v1581
      %1633 = vst [vmem:[%s194 + $0x80] sm:$0xff] %v1587
      %1634 = vst [vmem:[%s194 + $0x88] sm:$0xff] %v1591
      %1635 = vst [vmem:[%s194 + $0xa0] sm:$0xff] %v1597
      %1636 = vst [vmem:[%s194 + $0xa8] sm:$0xff] %v1601
      %1637 = vst [vmem:[%s194 + $0xc0] sm:$0xff] %v1607
      %1638 = vst [vmem:[%s194 + $0xc8] sm:$0xff] %v1611
      %1639 = vst [vmem:[%s194 + $0xe0] sm:$0xff] %v1617
      %1640 = vst [vmem:[%s194 + $0xe8] sm:$0xff] %v1621
      %s1641 = scalar_lea.vmem %s194, 16
      %1642 = vst [vmem:[%s1641] sm:$0xff] %v1549
      %1643 = vst [vmem:[%s1641 + $0x8] sm:$0xff] %v1553
      %1644 = vst [vmem:[%s1641 + $0x20] sm:$0xff] %v1559
      %1645 = vst [vmem:[%s1641 + $0x28] sm:$0xff] %v1563
      %1646 = vst [vmem:[%s1641 + $0x40] sm:$0xff] %v1569
      %1647 = vst [vmem:[%s1641 + $0x48] sm:$0xff] %v1573
      %1648 = vst [vmem:[%s1641 + $0x60] sm:$0xff] %v1579
      %1649 = vst [vmem:[%s1641 + $0x68] sm:$0xff] %v1583
      %1650 = vst [vmem:[%s1641 + $0x80] sm:$0xff] %v1589
      %1651 = vst [vmem:[%s1641 + $0x88] sm:$0xff] %v1593
      %1652 = vst [vmem:[%s1641 + $0xa0] sm:$0xff] %v1599
      %1653 = vst [vmem:[%s1641 + $0xa8] sm:$0xff] %v1603
      %1654 = vst [vmem:[%s1641 + $0xc0] sm:$0xff] %v1609
      %1655 = vst [vmem:[%s1641 + $0xc8] sm:$0xff] %v1613
      %1656 = vst [vmem:[%s1641 + $0xe0] sm:$0xff] %v1619
      %1657 = vst [vmem:[%s1641 + $0xe8] sm:$0xff] %v1623
      %s1658 = smul.u32 8, %s19
      %p1659 = scmp.lt.s32.totalorder %s18, 1
      %s1660 = scalar_select %p1659, %s18, 1
      %p1661 = scmp.lt.s32.totalorder %s1658, 15
      %s1662 = scalar_select %p1661, %s1658, 15
      %s1663 = smul.addr %s1662, 4
      %s1664 = smul.addr %s1660, 64
      %s1665 = sadd.s32 %s1663, %s1664
      %s1666 = smul.addr %s1665, 8
      %s1667 = scalar_lea.vmem %s3, %s1666
      // Predicated region
      $region33: #{upsample_forward.1} parent=31 // pred_check
        %p1668 = pneg %p114
      $region34: #{upsample_forward.1} parent=31 // pred_check_branch
        %1670 = sbr.rel (%p1668) target = $region36
      $region35: #{upsample_forward.1} parent=31 // pred_region
        %s1671 = smul.u32 8, %s19
      $region36: #{upsample_forward.1} parent=31 // pred_fallthru
        _
    $region32: #{upsample_forward.1} parent=5 // pred_fallthru
      _
    %p1672 = scmp.le.s32.totalorder 2, %s9
    // Predicated region
    $region37: #{upsample_forward.1} parent=5 // pred_check
      %p1673 = pneg %p1672
    $region38: #{upsample_forward.1} parent=5 // pred_check_branch
      %1675 = sbr.rel (%p1673) target = $region40
    $region39: #{upsample_forward.1} parent=5 // pred_region
      %s1676 = ssub.s32 %s9, 2
      // Predicated region
      $region41: #{upsample_forward.1} parent=39 // pred_check
        %p1677 = pneg %p120
      $region42: #{upsample_forward.1} parent=39 // pred_check_branch
        %1679 = sbr.rel (%p1677) target = $region44
      $region43: #{upsample_forward.1} parent=39 // pred_region
        %s1680 = smul.u32 8, %s21
        %p1681 = scmp.lt.s32.totalorder %s20, 1
        %s1682 = scalar_select %p1681, %s20, 1
        %p1683 = scmp.lt.s32.totalorder %s1680, 15
        %s1684 = scalar_select %p1683, %s1680, 15
        %s1685 = smul.addr %s1684, 4
        %s1686 = smul.addr %s1682, 64
        %s1687 = sadd.s32 %s1685, %s1686
        %s1688 = smul.addr %s1687, 8
        %s1689 = scalar_lea.vmem %s3, %s1688
      $region44: #{upsample_forward.1} parent=39 // pred_fallthru
        _
    $region40: #{upsample_forward.1} parent=5 // pred_fallthru
      _
  $region6: #{upsample_forward.1} parent=0 // loop_footer
    %s13 = sadd.s32 1, %s9
  $region7: #{upsample_forward.1} parent=0 // loop_footer_branch
    %8 = sbr.rel target = $region3
  $region8: #{upsample_forward.1} parent=0 // loop_exit
    _

</llo_original>
